<compile_context>
chip_gen: v5e
topology: v5e:2x2
jax: 0.10.0
libtpu: 0.0.40
codegen_flags: <defaults>
</compile_context>

<pallas_src>
import jax
import jax.numpy as jnp
from jax.experimental import pallas as pl
from jax.experimental.pallas import tpu as pltpu

NH = 512          # hidden width (hard-coded in the module)
EPS = 1e-5        # BatchNorm2d default eps
SLOPE = 0.01      # LeakyReLU default negative_slope
LANE = 128        # lane-dense padding for the final Linear output

# Rows of the packed (8, NH) per-feature parameter array.
_ROW_G1, _ROW_BE1, _ROW_G2, _ROW_BE2, _ROW_G3, _ROW_BE3, _ROW_BL = range(7)


def dis_softmax_kernel(x_ref, w1_ref, w2_ref, w3_ref, wl_ref, p_ref, o_ref):
    """One grid step = one complete forward (one group's full batch).

    3x (1x1 conv -> BN(train) -> LeakyReLU) -> Linear, all in VMEM.
    Weights / packed params have constant block indices -> DMA'd once for the
    whole grid; only x and out move per step.
    """
    p = p_ref[...]  # (8, NH) f32: packed BN affine params + final Linear bias

    def block(h, w_ref, g_row, b_row):
        # 1x1 Conv2d on (B, C, 1, 1) == matmul on (B, C): bf16 x bf16 -> f32.
        # (Conv bias omitted: exactly cancelled by the batch-mean subtraction.)
        z = jnp.dot(h.astype(jnp.bfloat16), w_ref[...],
                    preferred_element_type=jnp.float32)
        # BatchNorm2d, training mode: batch stats (H=W=1 so only over N),
        # biased variance (one-pass form), normalize+affine fused into one FMA.
        mu = jnp.mean(z, axis=0, keepdims=True)
        var = jnp.maximum(jnp.mean(z * z, axis=0, keepdims=True) - mu * mu, 0.0)
        s = p[g_row:g_row + 1, :] * jax.lax.rsqrt(var + EPS)
        t = p[b_row:b_row + 1, :] - mu * s
        zn = z * s + t
        # LeakyReLU(0.01)
        return jnp.maximum(zn, SLOPE * zn)

    h = x_ref[...]                        # (B, nz) f32
    h = block(h, w1_ref, _ROW_G1, _ROW_BE1)
    h = block(h, w2_ref, _ROW_G2, _ROW_BE2)
    h = block(h, w3_ref, _ROW_G3, _ROW_BE3)
    # nnSqueeze: (B, NH, 1, 1) -> (B, NH); already in that layout.
    # Final Linear(NH, domain_num + 1), lane-padded to 128 output columns.
    o_ref[...] = (jnp.dot(h.astype(jnp.bfloat16), wl_ref[...],
                          preferred_element_type=jnp.float32)
                  + p[_ROW_BL:_ROW_BL + 1, :LANE])


# ---------------------------------------------------------------------------
# Parameters and kernel-input preparation.
# ---------------------------------------------------------------------------
def init_params(key, nz, domain_num):
    """Deterministic f32 parameters matching the module's __init__ shapes."""
    ks = jax.random.split(key, 8)

    def wsc(k, shape, fan_in):
        return jax.random.normal(k, shape, jnp.float32) / jnp.sqrt(fan_in)

    nout = domain_num + 1
    ar = jnp.arange(NH, dtype=jnp.float32)[None, :] / NH
    return dict(
        # Conv2d weights are (out, in, 1, 1); stored transposed as (in, out)
        # so the kernel computes x @ W^T.  Conv biases are kept here for the
        # f32 reference, but the fused kernel drops them (BN cancels them).
        w1=wsc(ks[0], (nz, NH), nz), b1=wsc(ks[1], (1, NH), nz),
        w2=wsc(ks[2], (NH, NH), NH), b2=wsc(ks[3], (1, NH), NH),
        w3=wsc(ks[4], (NH, NH), NH), b3=wsc(ks[5], (1, NH), NH),
        # BatchNorm2d affine params, perturbed so the affine step is exercised.
        g1=1.0 + 0.01 * ar, be1=jnp.full((1, NH), 0.02, jnp.float32),
        g2=1.0 - 0.01 * ar, be2=jnp.full((1, NH), -0.01, jnp.float32),
        g3=jnp.ones((1, NH), jnp.float32), be3=jnp.zeros((1, NH), jnp.float32),
        # Linear(NH, domain_num + 1): weight (out, in) -> stored transposed.
        wl=wsc(ks[6], (NH, nout), NH), bl=wsc(ks[7], (1, nout), NH),
    )


def prepare_kernel_inputs(params):
    """bf16 matmul weights, conv biases dropped, params packed into one array.

    Returns (w1, w2, w3, wl_pad, packed) where packed is an (8, NH) f32 array
    holding [g1, be1, g2, be2, g3, be3, bl(lane-padded), 0].
    """
    nout = params["wl"].shape[-1]
    wl_pad = jnp.zeros((NH, LANE), jnp.bfloat16).at[:, :nout].set(
        params["wl"].astype(jnp.bfloat16))
    packed = jnp.zeros((8, NH), jnp.float32)
    packed = packed.at[_ROW_G1].set(params["g1"][0])
    packed = packed.at[_ROW_BE1].set(params["be1"][0])
    packed = packed.at[_ROW_G2].set(params["g2"][0])
    packed = packed.at[_ROW_BE2].set(params["be2"][0])
    packed = packed.at[_ROW_G3].set(params["g3"][0])
    packed = packed.at[_ROW_BE3].set(params["be3"][0])
    packed = packed.at[_ROW_BL, :nout].set(params["bl"][0])
    return (params["w1"].astype(jnp.bfloat16),
            params["w2"].astype(jnp.bfloat16),
            params["w3"].astype(jnp.bfloat16),
            wl_pad, packed)


# ---------------------------------------------------------------------------
# Forward wrappers.
# ---------------------------------------------------------------------------
def _run_grouped(x_gbn, params):
    """x_gbn: (G, B, nz) f32 — G independent forwards in one pallas_call."""
    G, B, nin = x_gbn.shape
    nout = params["wl"].shape[-1]
    w1, w2, w3, wl_pad, packed = prepare_kernel_inputs(params)

    const2d = lambda g: (0, 0)   # weights / params: fetched once, VMEM-resident
    out_pad = pl.pallas_call(
        dis_softmax_kernel,
        out_shape=jax.ShapeDtypeStruct((G, B, LANE), jnp.float32),
        grid=(G,),
        in_specs=[
            pl.BlockSpec((None, B, nin), lambda g: (g, 0, 0)),   # x: per-group
            pl.BlockSpec((nin, NH), const2d),                    # w1 (resident)
            pl.BlockSpec((NH, NH), const2d),                     # w2 (resident)
            pl.BlockSpec((NH, NH), const2d),                     # w3 (resident)
            pl.BlockSpec((NH, LANE), const2d),                   # wl (resident)
            pl.BlockSpec((8, NH), const2d),                      # packed params
        ],
        out_specs=pl.BlockSpec((None, B, LANE), lambda g: (g, 0, 0)),
        compiler_params=pltpu.CompilerParams(
            dimension_semantics=("parallel",),       # v7x: groups split over TCs
            vmem_limit_bytes=4 * 1024 * 1024),
    )(x_gbn.astype(jnp.float32), w1, w2, w3, wl_pad, packed)
    # Slice the lane-padded output back to the real width.
    return out_pad[:, :, :nout]


def dis_softmax_forward(x_nchw, params):
    """Module-equivalent single forward: x is NCHW (B, nz, 1, 1)."""
    B, nin, H, W = x_nchw.shape
    assert H == 1 and W == 1, "nnSqueeze + Linear requires 1x1 spatial input"
    x = x_nchw.reshape(1, B, nin).astype(jnp.float32)
    return _run_grouped(x, params)[0]


def dis_softmax_forward_grouped(x_groups, params):
    """G independent forwards in one call.  x_groups: (G, B, nz[, 1, 1])."""
    if x_groups.ndim == 5:
        G, B, nin, H, W = x_groups.shape
        assert H == 1 and W == 1, "nnSqueeze + Linear requires 1x1 spatial input"
        x_groups = x_groups.reshape(G, B, nin)
    return _run_grouped(x_groups.astype(jnp.float32), params)


# ---------------------------------------------------------------------------
# References for correctness checking.
# ---------------------------------------------------------------------------
def _bn_lrelu_f32(z, g, be):
    mu = z.mean(axis=0, keepdims=True)
    var = ((z - mu) ** 2).mean(axis=0, keepdims=True)
    zn = (z - mu) / jnp.sqrt(var + EPS) * g + be
    return jnp.where(zn >= 0, zn, SLOPE * zn)


def reference_forward_f32(x_bn, params):
    """Pure-f32 JAX reference of the PyTorch forward (training-mode BN).
    x_bn: (B, nz)."""
    p = params
    h = x_bn.astype(jnp.float32)
    h = _bn_lrelu_f32(h @ p["w1"] + p["b1"], p["g1"], p["be1"])
    h = _bn_lrelu_f32(h @ p["w2"] + p["b2"], p["g2"], p["be2"])
    h = _bn_lrelu_f32(h @ p["w3"] + p["b3"], p["g3"], p["be3"])
    return h @ p["wl"] + p["bl"]


def _bn_lrelu_matched(z, g, be):
    mu = z.mean(axis=0, keepdims=True)
    var = jnp.maximum((z * z).mean(axis=0, keepdims=True) - mu * mu, 0.0)
    s = g * jax.lax.rsqrt(var + EPS)
    zn = z * s + (be - mu * s)
    return jnp.maximum(zn, SLOPE * zn)


def reference_forward_matched(x_bn, params):
    """Reference matching the kernel numerics: bf16 matmul inputs, f32
    accumulation, one-pass variance, conv biases dropped (exactly cancelled by
    training-mode BN).  x_bn: (B, nz)."""
    p = params

    def qdot(a, w):
        return jnp.dot(a.astype(jnp.bfloat16).astype(jnp.float32),
                       w.astype(jnp.bfloat16).astype(jnp.float32))

    h = x_bn.astype(jnp.float32)
    h = _bn_lrelu_matched(qdot(h, p["w1"]), p["g1"], p["be1"])
    h = _bn_lrelu_matched(qdot(h, p["w2"]), p["g2"], p["be2"])
    h = _bn_lrelu_matched(qdot(h, p["w3"]), p["g3"], p["be3"])
    return qdot(h, p["wl"]) + p["bl"]


if __name__ == "__main__":
    key = jax.random.PRNGKey(0)
    k_x, k_p = jax.random.split(key)

    G = 4            # independent forwards sharing one weight DMA (grid axis)
    B = 8            # batch per forward
    NZ = 64          # opt.nz
    DOMAIN_NUM = 3   # opt.domain_num -> output dim = 4

    x_groups = jax.random.normal(k_x, (G, B, NZ, 1, 1), jnp.float32)  # NCHW groups
    params = init_params(k_p, NZ, DOMAIN_NUM)

    # Grouped call: one pallas_call, weights DMA'd once, G forwards pipelined.
    out_g = dis_softmax_forward_grouped(x_groups, params)
    out_g = jax.block_until_ready(out_g)
    assert out_g.shape == (G, B, DOMAIN_NUM + 1)

    # Per-group references (training-mode BN stats are per forward == per group).
    x_flat = x_groups.reshape(G, B, NZ)
    ref_m = jnp.stack([reference_forward_matched(x_flat[g], params)
                       for g in range(G)])
    assert jnp.allclose(out_g, ref_m, atol=1e-3, rtol=1e-3), \
        "mismatch vs matched reference"

    ref_f32 = jnp.stack([reference_forward_f32(x_flat[g], params)
                         for g in range(G)])
    assert jnp.allclose(out_g, ref_f32, atol=0.5, rtol=0.5), \
        "gross mismatch vs f32 reference"

    # Module-equivalent single forward (NCHW input, G=1 grid) sanity check.
    out_1 = dis_softmax_forward(x_groups[0], params)
    out_1 = jax.block_until_ready(out_1)
    assert out_1.shape == (B, DOMAIN_NUM + 1)
    assert jnp.allclose(out_1, out_g[0], atol=1e-5, rtol=1e-5), \
        "single-forward path disagrees with grouped path"

    print("KERNEL_OK")
</pallas_src>

<mosaic_0001>
module attributes {stable_mosaic.version = 11 : i64} {
  func.func @dis_softmax_kernel(%arg0: i32, %arg1: memref<1x8x64xf32, #tpu.memory_space<vmem>>, %arg2: memref<64x512xbf16, #tpu.memory_space<vmem>>, %arg3: memref<512x512xbf16, #tpu.memory_space<vmem>>, %arg4: memref<512x512xbf16, #tpu.memory_space<vmem>>, %arg5: memref<512x128xbf16, #tpu.memory_space<vmem>>, %arg6: memref<8x512xf32, #tpu.memory_space<vmem>>, %arg7: memref<1x8x128xf32, #tpu.memory_space<vmem>>) attributes {dimension_semantics = [#tpu.dimension_semantics<parallel>], iteration_bounds = array<i64: 4>, scalar_prefetch = 0 : i64, scratch_operands = 0 : i64, tpu.core_type = #tpu.core_type<tc>, window_params = [{transform_indices = @transform_0, window_bounds = array<i64: 1, 8, 64>}, {pipeline_mode = #tpu.pipeline_mode<synchronous>, transform_indices = @transform_1, window_bounds = array<i64: 64, 512>}, {pipeline_mode = #tpu.pipeline_mode<synchronous>, transform_indices = @transform_2, window_bounds = array<i64: 512, 512>}, {pipeline_mode = #tpu.pipeline_mode<synchronous>, transform_indices = @transform_3, window_bounds = array<i64: 512, 512>}, {pipeline_mode = #tpu.pipeline_mode<synchronous>, transform_indices = @transform_4, window_bounds = array<i64: 512, 128>}, {pipeline_mode = #tpu.pipeline_mode<synchronous>, transform_indices = @transform_5, window_bounds = array<i64: 8, 512>}, {transform_indices = @transform_6, window_bounds = array<i64: 1, 8, 128>}]} {
    %c0 = arith.constant 0 : index
    %c0_0 = arith.constant 0 : index
    %0 = vector.load %arg6[%c0, %c0_0] : memref<8x512xf32, #tpu.memory_space<vmem>>, vector<8x512xf32>
    %c0_1 = arith.constant 0 : index
    %c0_2 = arith.constant 0 : index
    %c0_3 = arith.constant 0 : index
    %1 = vector.load %arg1[%c0_1, %c0_2, %c0_3] : memref<1x8x64xf32, #tpu.memory_space<vmem>>, vector<1x8x64xf32>
    %2 = vector.shape_cast %1 : vector<1x8x64xf32> to vector<8x64xf32>
    %3 = arith.truncf %2 : vector<8x64xf32> to vector<8x64xbf16>
    %c0_4 = arith.constant 0 : index
    %c0_5 = arith.constant 0 : index
    %4 = vector.load %arg2[%c0_4, %c0_5] : memref<64x512xbf16, #tpu.memory_space<vmem>>, vector<64x512xbf16>
    %cst = arith.constant dense<0.000000e+00> : vector<8x512xf32>
    %5 = tpu.matmul %3, %4, %cst {dimension_numbers = #tpu.dot_dimension_numbers<[1], [0], [0], [1], [0, 0, 1, 1], [], []>} : vector<8x64xbf16>, vector<64x512xbf16>, vector<8x512xf32> -> vector<8x512xf32>
    %cst_6 = arith.constant dense<0.000000e+00> : vector<512xf32>
    %6 = vector.multi_reduction <add>, %5, %cst_6 [0] : vector<8x512xf32> to vector<512xf32>
    %7 = vector.shape_cast %6 : vector<512xf32> to vector<1x512xf32>
    %cst_7 = arith.constant 8.000000e+00 : f32
    %8 = vector.broadcast %cst_7 : f32 to vector<1x512xf32>
    %9 = arith.divf %7, %8 : vector<1x512xf32>
    %10 = arith.mulf %5, %5 : vector<8x512xf32>
    %cst_8 = arith.constant dense<0.000000e+00> : vector<512xf32>
    %11 = vector.multi_reduction <add>, %10, %cst_8 [0] : vector<8x512xf32> to vector<512xf32>
    %12 = vector.shape_cast %11 : vector<512xf32> to vector<1x512xf32>
    %cst_9 = arith.constant 8.000000e+00 : f32
    %13 = vector.broadcast %cst_9 : f32 to vector<1x512xf32>
    %14 = arith.divf %12, %13 : vector<1x512xf32>
    %15 = arith.mulf %9, %9 : vector<1x512xf32>
    %16 = arith.subf %14, %15 : vector<1x512xf32>
    %cst_10 = arith.constant 0.000000e+00 : f32
    %17 = vector.broadcast %cst_10 : f32 to vector<1x512xf32>
    %18 = arith.maximumf %16, %17 : vector<1x512xf32>
    %19 = vector.extract_strided_slice %0 {offsets = [0, 0], sizes = [1, 512], strides = [1, 1]} : vector<8x512xf32> to vector<1x512xf32>
    %cst_11 = arith.constant 9.99999974E-6 : f32
    %20 = vector.broadcast %cst_11 : f32 to vector<1x512xf32>
    %21 = arith.addf %18, %20 : vector<1x512xf32>
    %22 = math.rsqrt %21 : vector<1x512xf32>
    %23 = arith.mulf %19, %22 : vector<1x512xf32>
    %24 = vector.extract_strided_slice %0 {offsets = [1, 0], sizes = [1, 512], strides = [1, 1]} : vector<8x512xf32> to vector<1x512xf32>
    %25 = arith.mulf %9, %23 : vector<1x512xf32>
    %26 = arith.subf %24, %25 : vector<1x512xf32>
    %27 = vector.broadcast %23 : vector<1x512xf32> to vector<8x512xf32>
    %28 = arith.mulf %5, %27 : vector<8x512xf32>
    %29 = vector.broadcast %26 : vector<1x512xf32> to vector<8x512xf32>
    %30 = arith.addf %28, %29 : vector<8x512xf32>
    %cst_12 = arith.constant 0.00999999977 : f32
    %31 = vector.broadcast %cst_12 : f32 to vector<8x512xf32>
    %32 = arith.mulf %31, %30 : vector<8x512xf32>
    %33 = arith.maximumf %30, %32 : vector<8x512xf32>
    %34 = arith.truncf %33 : vector<8x512xf32> to vector<8x512xbf16>
    %c0_13 = arith.constant 0 : index
    %c0_14 = arith.constant 0 : index
    %35 = vector.load %arg3[%c0_13, %c0_14] : memref<512x512xbf16, #tpu.memory_space<vmem>>, vector<512x512xbf16>
    %cst_15 = arith.constant dense<0.000000e+00> : vector<8x512xf32>
    %36 = tpu.matmul %34, %35, %cst_15 {dimension_numbers = #tpu.dot_dimension_numbers<[1], [0], [0], [1], [0, 0, 1, 1], [], []>} : vector<8x512xbf16>, vector<512x512xbf16>, vector<8x512xf32> -> vector<8x512xf32>
    %cst_16 = arith.constant dense<0.000000e+00> : vector<512xf32>
    %37 = vector.multi_reduction <add>, %36, %cst_16 [0] : vector<8x512xf32> to vector<512xf32>
    %38 = vector.shape_cast %37 : vector<512xf32> to vector<1x512xf32>
    %cst_17 = arith.constant 8.000000e+00 : f32
    %39 = vector.broadcast %cst_17 : f32 to vector<1x512xf32>
    %40 = arith.divf %38, %39 : vector<1x512xf32>
    %41 = arith.mulf %36, %36 : vector<8x512xf32>
    %cst_18 = arith.constant dense<0.000000e+00> : vector<512xf32>
    %42 = vector.multi_reduction <add>, %41, %cst_18 [0] : vector<8x512xf32> to vector<512xf32>
    %43 = vector.shape_cast %42 : vector<512xf32> to vector<1x512xf32>
    %cst_19 = arith.constant 8.000000e+00 : f32
    %44 = vector.broadcast %cst_19 : f32 to vector<1x512xf32>
    %45 = arith.divf %43, %44 : vector<1x512xf32>
    %46 = arith.mulf %40, %40 : vector<1x512xf32>
    %47 = arith.subf %45, %46 : vector<1x512xf32>
    %cst_20 = arith.constant 0.000000e+00 : f32
    %48 = vector.broadcast %cst_20 : f32 to vector<1x512xf32>
    %49 = arith.maximumf %47, %48 : vector<1x512xf32>
    %50 = vector.extract_strided_slice %0 {offsets = [2, 0], sizes = [1, 512], strides = [1, 1]} : vector<8x512xf32> to vector<1x512xf32>
    %cst_21 = arith.constant 9.99999974E-6 : f32
    %51 = vector.broadcast %cst_21 : f32 to vector<1x512xf32>
    %52 = arith.addf %49, %51 : vector<1x512xf32>
    %53 = math.rsqrt %52 : vector<1x512xf32>
    %54 = arith.mulf %50, %53 : vector<1x512xf32>
    %55 = vector.extract_strided_slice %0 {offsets = [3, 0], sizes = [1, 512], strides = [1, 1]} : vector<8x512xf32> to vector<1x512xf32>
    %56 = arith.mulf %40, %54 : vector<1x512xf32>
    %57 = arith.subf %55, %56 : vector<1x512xf32>
    %58 = vector.broadcast %54 : vector<1x512xf32> to vector<8x512xf32>
    %59 = arith.mulf %36, %58 : vector<8x512xf32>
    %60 = vector.broadcast %57 : vector<1x512xf32> to vector<8x512xf32>
    %61 = arith.addf %59, %60 : vector<8x512xf32>
    %cst_22 = arith.constant 0.00999999977 : f32
    %62 = vector.broadcast %cst_22 : f32 to vector<8x512xf32>
    %63 = arith.mulf %62, %61 : vector<8x512xf32>
    %64 = arith.maximumf %61, %63 : vector<8x512xf32>
    %65 = arith.truncf %64 : vector<8x512xf32> to vector<8x512xbf16>
    %c0_23 = arith.constant 0 : index
    %c0_24 = arith.constant 0 : index
    %66 = vector.load %arg4[%c0_23, %c0_24] : memref<512x512xbf16, #tpu.memory_space<vmem>>, vector<512x512xbf16>
    %cst_25 = arith.constant dense<0.000000e+00> : vector<8x512xf32>
    %67 = tpu.matmul %65, %66, %cst_25 {dimension_numbers = #tpu.dot_dimension_numbers<[1], [0], [0], [1], [0, 0, 1, 1], [], []>} : vector<8x512xbf16>, vector<512x512xbf16>, vector<8x512xf32> -> vector<8x512xf32>
    %cst_26 = arith.constant dense<0.000000e+00> : vector<512xf32>
    %68 = vector.multi_reduction <add>, %67, %cst_26 [0] : vector<8x512xf32> to vector<512xf32>
    %69 = vector.shape_cast %68 : vector<512xf32> to vector<1x512xf32>
    %cst_27 = arith.constant 8.000000e+00 : f32
    %70 = vector.broadcast %cst_27 : f32 to vector<1x512xf32>
    %71 = arith.divf %69, %70 : vector<1x512xf32>
    %72 = arith.mulf %67, %67 : vector<8x512xf32>
    %cst_28 = arith.constant dense<0.000000e+00> : vector<512xf32>
    %73 = vector.multi_reduction <add>, %72, %cst_28 [0] : vector<8x512xf32> to vector<512xf32>
    %74 = vector.shape_cast %73 : vector<512xf32> to vector<1x512xf32>
    %cst_29 = arith.constant 8.000000e+00 : f32
    %75 = vector.broadcast %cst_29 : f32 to vector<1x512xf32>
    %76 = arith.divf %74, %75 : vector<1x512xf32>
    %77 = arith.mulf %71, %71 : vector<1x512xf32>
    %78 = arith.subf %76, %77 : vector<1x512xf32>
    %cst_30 = arith.constant 0.000000e+00 : f32
    %79 = vector.broadcast %cst_30 : f32 to vector<1x512xf32>
    %80 = arith.maximumf %78, %79 : vector<1x512xf32>
    %81 = vector.extract_strided_slice %0 {offsets = [4, 0], sizes = [1, 512], strides = [1, 1]} : vector<8x512xf32> to vector<1x512xf32>
    %cst_31 = arith.constant 9.99999974E-6 : f32
    %82 = vector.broadcast %cst_31 : f32 to vector<1x512xf32>
    %83 = arith.addf %80, %82 : vector<1x512xf32>
    %84 = math.rsqrt %83 : vector<1x512xf32>
    %85 = arith.mulf %81, %84 : vector<1x512xf32>
    %86 = vector.extract_strided_slice %0 {offsets = [5, 0], sizes = [1, 512], strides = [1, 1]} : vector<8x512xf32> to vector<1x512xf32>
    %87 = arith.mulf %71, %85 : vector<1x512xf32>
    %88 = arith.subf %86, %87 : vector<1x512xf32>
    %89 = vector.broadcast %85 : vector<1x512xf32> to vector<8x512xf32>
    %90 = arith.mulf %67, %89 : vector<8x512xf32>
    %91 = vector.broadcast %88 : vector<1x512xf32> to vector<8x512xf32>
    %92 = arith.addf %90, %91 : vector<8x512xf32>
    %cst_32 = arith.constant 0.00999999977 : f32
    %93 = vector.broadcast %cst_32 : f32 to vector<8x512xf32>
    %94 = arith.mulf %93, %92 : vector<8x512xf32>
    %95 = arith.maximumf %92, %94 : vector<8x512xf32>
    %96 = arith.truncf %95 : vector<8x512xf32> to vector<8x512xbf16>
    %c0_33 = arith.constant 0 : index
    %c0_34 = arith.constant 0 : index
    %97 = vector.load %arg5[%c0_33, %c0_34] : memref<512x128xbf16, #tpu.memory_space<vmem>>, vector<512x128xbf16>
    %cst_35 = arith.constant dense<0.000000e+00> : vector<8x128xf32>
    %98 = tpu.matmul %96, %97, %cst_35 {dimension_numbers = #tpu.dot_dimension_numbers<[1], [0], [0], [1], [0, 0, 1, 1], [], []>} : vector<8x512xbf16>, vector<512x128xbf16>, vector<8x128xf32> -> vector<8x128xf32>
    %99 = vector.extract_strided_slice %0 {offsets = [6, 0], sizes = [1, 128], strides = [1, 1]} : vector<8x512xf32> to vector<1x128xf32>
    %100 = vector.broadcast %99 : vector<1x128xf32> to vector<8x128xf32>
    %101 = arith.addf %98, %100 : vector<8x128xf32>
    %c0_36 = arith.constant 0 : index
    %c0_37 = arith.constant 0 : index
    %c0_38 = arith.constant 0 : index
    %102 = vector.load %arg7[%c0_36, %c0_37, %c0_38] : memref<1x8x128xf32, #tpu.memory_space<vmem>>, vector<1x8x128xf32>
    %103 = vector.shape_cast %102 : vector<1x8x128xf32> to vector<8x128xf32>
    %104 = vector.shape_cast %101 : vector<8x128xf32> to vector<1x8x128xf32>
    tpu.vector_store %arg7[%c0_36, %c0_37, %c0_38], %104 {strides = array<i32>} : memref<1x8x128xf32, #tpu.memory_space<vmem>>, vector<1x8x128xf32>,
    return
  }
  func.func @transform_0(%arg0: i32) -> (i32, i32, i32) {
    %c0_i32 = arith.constant 0 : i32
    %c0_i32_0 = arith.constant 0 : i32
    %c0_i32_1 = arith.constant 0 : i32
    return %arg0, %c0_i32, %c0_i32_0 : i32, i32, i32
  }
  func.func @transform_1(%arg0: i32) -> (i32, i32) {
    %c0_i32 = arith.constant 0 : i32
    %c0_i32_0 = arith.constant 0 : i32
    %c0_i32_1 = arith.constant 0 : i32
    return %c0_i32, %c0_i32_0 : i32, i32
  }
  func.func @transform_2(%arg0: i32) -> (i32, i32) {
    %c0_i32 = arith.constant 0 : i32
    %c0_i32_0 = arith.constant 0 : i32
    %c0_i32_1 = arith.constant 0 : i32
    return %c0_i32, %c0_i32_0 : i32, i32
  }
  func.func @transform_3(%arg0: i32) -> (i32, i32) {
    %c0_i32 = arith.constant 0 : i32
    %c0_i32_0 = arith.constant 0 : i32
    %c0_i32_1 = arith.constant 0 : i32
    return %c0_i32, %c0_i32_0 : i32, i32
  }
  func.func @transform_4(%arg0: i32) -> (i32, i32) {
    %c0_i32 = arith.constant 0 : i32
    %c0_i32_0 = arith.constant 0 : i32
    %c0_i32_1 = arith.constant 0 : i32
    return %c0_i32, %c0_i32_0 : i32, i32
  }
  func.func @transform_5(%arg0: i32) -> (i32, i32) {
    %c0_i32 = arith.constant 0 : i32
    %c0_i32_0 = arith.constant 0 : i32
    %c0_i32_1 = arith.constant 0 : i32
    return %c0_i32, %c0_i32_0 : i32, i32
  }
  func.func @transform_6(%arg0: i32) -> (i32, i32, i32) {
    %c0_i32 = arith.constant 0 : i32
    %c0_i32_0 = arith.constant 0 : i32
    %c0_i32_1 = arith.constant 0 : i32
    return %arg0, %c0_i32, %c0_i32_0 : i32, i32, i32
  }
}

</mosaic_0001>

<llo_original>
// kernel: tpu_custom_call.1
$region0: #{tpu_custom_call.1}
  #allocation0 [shape = 'u32[]', space=smem, size = 0x4, offset = 0x4, fixed_abs, tag = 'smem constant byte address 0x4 - core index']
  #allocation1 [shape = 'u32[72,128]{1,0:T(1,128)}', space=vmem, size = 0x9000, scoped, tag = 'internal scratch']
  %s0 = inlined_call_operand.hbm [shape: f32[4,8,64], index: 0, kind: input, shape index: {}]
  %s1 = inlined_call_operand.hbm [shape: bf16[64,512], index: 1, kind: input, shape index: {}]
  %s2 = inlined_call_operand.hbm [shape: bf16[512,512], index: 2, kind: input, shape index: {}]
  %s3 = inlined_call_operand.hbm [shape: bf16[512,512], index: 3, kind: input, shape index: {}]
  %s4 = inlined_call_operand.hbm [shape: bf16[512,128], index: 4, kind: input, shape index: {}]
  %s5 = inlined_call_operand.hbm [shape: f32[8,512], index: 5, kind: input, shape index: {}]
  %s6 = inlined_call_operand.hbm [shape: f32[4,8,128], index: 6, kind: output, shape index: {}]
  %s7 = sld [smem:[#allocation0]]
  $region81: #{tpu_custom_call.1} parent=0
    _
  %s9 = ssub.s32 1, %s7
  %s10 = scalar_select 0, %s9, %s7
  $region1: #{tpu_custom_call.1} parent=0
    #allocation2 [shape = 'u8[8192]{0}', space=vmem, size = 0x2000, scoped, tag = 'input window, operand 0']
    #allocation3 [shape = 's32[2]{0}', space=sflag, size = 0x8, scoped, tag = 'scoped memory for tpu_custom_call.1']
    #allocation4 [shape = 's32[2]{0}', space=sflag, size = 0x8, scoped, tag = 'scoped memory for tpu_custom_call.1']
    #allocation5 [shape = 'u8[65536]{0}', space=vmem, size = 0x10000, scoped, tag = 'input window, operand 1, single buffered']
    #allocation6 [shape = 's32[1]{0}', space=sflag, size = 0x4, scoped, tag = 'scoped memory for tpu_custom_call.1']
    #allocation7 [shape = 'u8[524288]{0}', space=vmem, size = 0x80000, scoped, tag = 'input window, operand 2, single buffered']
    #allocation8 [shape = 'u8[524288]{0}', space=vmem, size = 0x80000, scoped, tag = 'input window, operand 3, single buffered']
    #allocation9 [shape = 's32[1]{0}', space=sflag, size = 0x4, scoped, tag = 'scoped memory for tpu_custom_call.1']
    #allocation10 [shape = 'u8[131072]{0}', space=vmem, size = 0x20000, scoped, tag = 'input window, operand 4, single buffered']
    #allocation11 [shape = 'u8[16384]{0}', space=vmem, size = 0x4000, scoped, tag = 'input window, operand 5, single buffered']
    #allocation12 [shape = 's32[1]{0}', space=sflag, size = 0x4, scoped, tag = 'scoped memory for tpu_custom_call.1']
    #allocation13 [shape = 'u8[8192]{0}', space=vmem, size = 0x2000, scoped, tag = 'output window, operand 0']
    %11 = vsyncpa [#allocation3], 0
    %s12 = scalar_lea.sflag [#allocation3], 1
    %13 = vsyncpa %s12, 0
    %14 = vsyncpa [#allocation6], 0
    %15 = vsyncpa [#allocation9], 0
    %16 = vsyncpa [#allocation12], 0
    %17 = vsyncpa [#allocation4], 0
    %s18 = scalar_lea.sflag [#allocation4], 1
    %19 = vsyncpa %s18, 0
    loop: start=0, step=1, limit=6
    $region2: #{tpu_custom_call.1} parent=1 // loop_pre_header
      _
    $region3: #{tpu_custom_call.1} parent=1 // loop_header
      %s21 = sphi 0, %s25
      %p22 = scmp.ge.s32.totalorder %s21, 6
      %s31 = sphi 0, %s33
      %s34 = sphi 0, %s31
      %s35 = sphi 0, %s34
      %s51 = sphi 0, %s35
      %s55 = sphi 0, %s55
      %s57 = sphi 0, %s55
      %s58 = sphi 0, %s57
      %s72 = sphi 0, %s58
      %s76 = sphi 0, %s76
      %s78 = sphi 0, %s76
      %s79 = sphi 0, %s78
      %s93 = sphi 0, %s79
      %s97 = sphi 0, %s97
      %s99 = sphi 0, %s97
      %s100 = sphi 0, %s99
      %s114 = sphi 0, %s100
      %s118 = sphi 0, %s118
      %s120 = sphi 0, %s118
      %s121 = sphi 0, %s120
      %s135 = sphi 0, %s121
      %s139 = sphi 0, %s139
      %s141 = sphi 0, %s139
      %s142 = sphi 0, %s141
      %s156 = sphi 0, %s142
      %s162 = sphi 0, %s164
      %s165 = sphi 0, %s162
      %s166 = sphi 0, %s165
      %s182 = sphi 0, %s166
    $region4: #{tpu_custom_call.1} parent=1 // loop_header_branch
      %24 = sbr.rel (%p22) target = $region8
    $region5: #{tpu_custom_call.1} parent=1 // loop_body
      %s26 = ssub.s32 %s21, 1
      %s27 = ssub.s32 %s21, 2
      %s28 = sadd.s32 %s21, 1
      %s29 = ssub.s32 %s21, %s28
      %p30 = scmp.eq.s32.totalorder %s29, 0
      %s32 = sadd.s32 %s31, 1
      %s33 = scalar_select %p30, %s31, %s32
      %p36 = pneg %p30
      %p37 = scmp.eq.s32.totalorder %s21, 3
      %p38 = por %p36, %p37
      %p39 = scmp.ne.s32.totalorder %s31, %s34
      %p40 = scmp.eq.s32.totalorder %s21, 0
      %p41 = por %p39, %p40
      %p42 = scmp.ne.s32.totalorder %s31, %s34
      %p43 = scmp.eq.s32.totalorder %s26, 3
      %p44 = por %p42, %p43
      %p45 = scmp.ne.s32.totalorder %s34, %s35
      %p46 = scmp.eq.s32.totalorder %s26, 0
      %p47 = por %p45, %p46
      %p48 = scmp.ne.s32.totalorder %s34, %s35
      %p49 = scmp.eq.s32.totalorder %s27, 3
      %p50 = por %p48, %p49
      %p52 = scmp.ne.s32.totalorder %s35, %s51
      %p53 = scmp.eq.s32.totalorder %s27, 0
      %p54 = por %p52, %p53
      %s56 = sadd.s32 %s55, 1
      %p59 = scmp.eq.s32.totalorder %s21, 3
      %p60 = scmp.ne.s32.totalorder %s55, %s57
      %p61 = scmp.eq.s32.totalorder %s21, 0
      %p62 = por %p60, %p61
      %p63 = scmp.ne.s32.totalorder %s55, %s57
      %p64 = scmp.eq.s32.totalorder %s26, 3
      %p65 = por %p63, %p64
      %p66 = scmp.ne.s32.totalorder %s57, %s58
      %p67 = scmp.eq.s32.totalorder %s26, 0
      %p68 = por %p66, %p67
      %p69 = scmp.ne.s32.totalorder %s57, %s58
      %p70 = scmp.eq.s32.totalorder %s27, 3
      %p71 = por %p69, %p70
      %p73 = scmp.ne.s32.totalorder %s58, %s72
      %p74 = scmp.eq.s32.totalorder %s27, 0
      %p75 = por %p73, %p74
      %s77 = sadd.s32 %s76, 1
      %p80 = scmp.eq.s32.totalorder %s21, 3
      %p81 = scmp.ne.s32.totalorder %s76, %s78
      %p82 = scmp.eq.s32.totalorder %s21, 0
      %p83 = por %p81, %p82
      %p84 = scmp.ne.s32.totalorder %s76, %s78
      %p85 = scmp.eq.s32.totalorder %s26, 3
      %p86 = por %p84, %p85
      %p87 = scmp.ne.s32.totalorder %s78, %s79
      %p88 = scmp.eq.s32.totalorder %s26, 0
      %p89 = por %p87, %p88
      %p90 = scmp.ne.s32.totalorder %s78, %s79
      %p91 = scmp.eq.s32.totalorder %s27, 3
      %p92 = por %p90, %p91
      %p94 = scmp.ne.s32.totalorder %s79, %s93
      %p95 = scmp.eq.s32.totalorder %s27, 0
      %p96 = por %p94, %p95
      %s98 = sadd.s32 %s97, 1
      %p101 = scmp.eq.s32.totalorder %s21, 3
      %p102 = scmp.ne.s32.totalorder %s97, %s99
      %p103 = scmp.eq.s32.totalorder %s21, 0
      %p104 = por %p102, %p103
      %p105 = scmp.ne.s32.totalorder %s97, %s99
      %p106 = scmp.eq.s32.totalorder %s26, 3
      %p107 = por %p105, %p106
      %p108 = scmp.ne.s32.totalorder %s99, %s100
      %p109 = scmp.eq.s32.totalorder %s26, 0
      %p110 = por %p108, %p109
      %p111 = scmp.ne.s32.totalorder %s99, %s100
      %p112 = scmp.eq.s32.totalorder %s27, 3
      %p113 = por %p111, %p112
      %p115 = scmp.ne.s32.totalorder %s100, %s114
      %p116 = scmp.eq.s32.totalorder %s27, 0
      %p117 = por %p115, %p116
      %s119 = sadd.s32 %s118, 1
      %p122 = scmp.eq.s32.totalorder %s21, 3
      %p123 = scmp.ne.s32.totalorder %s118, %s120
      %p124 = scmp.eq.s32.totalorder %s21, 0
      %p125 = por %p123, %p124
      %p126 = scmp.ne.s32.totalorder %s118, %s120
      %p127 = scmp.eq.s32.totalorder %s26, 3
      %p128 = por %p126, %p127
      %p129 = scmp.ne.s32.totalorder %s120, %s121
      %p130 = scmp.eq.s32.totalorder %s26, 0
      %p131 = por %p129, %p130
      %p132 = scmp.ne.s32.totalorder %s120, %s121
      %p133 = scmp.eq.s32.totalorder %s27, 3
      %p134 = por %p132, %p133
      %p136 = scmp.ne.s32.totalorder %s121, %s135
      %p137 = scmp.eq.s32.totalorder %s27, 0
      %p138 = por %p136, %p137
      %s140 = sadd.s32 %s139, 1
      %p143 = scmp.eq.s32.totalorder %s21, 3
      %p144 = scmp.ne.s32.totalorder %s139, %s141
      %p145 = scmp.eq.s32.totalorder %s21, 0
      %p146 = por %p144, %p145
      %p147 = scmp.ne.s32.totalorder %s139, %s141
      %p148 = scmp.eq.s32.totalorder %s26, 3
      %p149 = por %p147, %p148
      %p150 = scmp.ne.s32.totalorder %s141, %s142
      %p151 = scmp.eq.s32.totalorder %s26, 0
      %p152 = por %p150, %p151
      %p153 = scmp.ne.s32.totalorder %s141, %s142
      %p154 = scmp.eq.s32.totalorder %s27, 3
      %p155 = por %p153, %p154
      %p157 = scmp.ne.s32.totalorder %s142, %s156
      %p158 = scmp.eq.s32.totalorder %s27, 0
      %p159 = por %p157, %p158
      %s160 = ssub.s32 %s21, %s28
      %p161 = scmp.eq.s32.totalorder %s160, 0
      %s163 = sadd.s32 %s162, 1
      %s164 = scalar_select %p161, %s162, %s163
      %p167 = pneg %p161
      %p168 = scmp.eq.s32.totalorder %s21, 3
      %p169 = por %p167, %p168
      %p170 = scmp.ne.s32.totalorder %s162, %s165
      %p171 = scmp.eq.s32.totalorder %s21, 0
      %p172 = por %p170, %p171
      %p173 = scmp.ne.s32.totalorder %s162, %s165
      %p174 = scmp.eq.s32.totalorder %s26, 3
      %p175 = por %p173, %p174
      %p176 = scmp.ne.s32.totalorder %s165, %s166
      %p177 = scmp.eq.s32.totalorder %s26, 0
      %p178 = por %p176, %p177
      %p179 = scmp.ne.s32.totalorder %s165, %s166
      %p180 = scmp.eq.s32.totalorder %s27, 3
      %p181 = por %p179, %p180
      %p183 = scmp.ne.s32.totalorder %s166, %s182
      %p184 = scmp.eq.s32.totalorder %s27, 0
      %p185 = por %p183, %p184
      %p186 = scmp.le.s32.totalorder 1, %s21
      %p187 = scmp.lt.s32.totalorder %s21, 5
      %p188 = pnand %p186, %p187
      %p189 = pneg %p188
      // Predicated region
      $region9: #{tpu_custom_call.1} parent=5 // pred_check
        _
      $region10: #{tpu_custom_call.1} parent=5 // pred_check_branch
        %191 = sbr.rel (%p188) target = $region12
      $region11: #{tpu_custom_call.1} parent=5 // pred_region
        %s192 = ssub.s32 %s21, 1
        // Predicated region
        $region13: #{tpu_custom_call.1} parent=11 // pred_check
          %p193 = pneg %p68
        $region14: #{tpu_custom_call.1} parent=11 // pred_check_branch
          %195 = sbr.rel (%p193) target = $region16
        $region15: #{tpu_custom_call.1} parent=11 // pred_region
          %197 = vsyncadd [#allocation6], 0
          %s198 = sshll.u32 %s1, 4
          %s199 = int_to_ptr.hbm [resolvable:$true] %s198
          %s200 = sshll.u32 [#allocation5], 4
          %s201 = int_to_ptr.vmem [resolvable:$true] %s200
          %206 = dma.hbm_to_vmem [thread:$0]  %s199, 2048, %s201, [#allocation6], 256, 256, 16
        $region16: #{tpu_custom_call.1} parent=11 // pred_fallthru
          _
        // Predicated region
        $region17: #{tpu_custom_call.1} parent=11 // pred_check
          %p207 = pneg %p89
        $region18: #{tpu_custom_call.1} parent=11 // pred_check_branch
          %209 = sbr.rel (%p207) target = $region20
        $region19: #{tpu_custom_call.1} parent=11 // pred_region
          %211 = vsyncadd [#allocation6], 0
          %s212 = sshll.u32 %s2, 4
          %s213 = int_to_ptr.hbm [resolvable:$true] %s212
          %s214 = sshll.u32 [#allocation7], 4
          %s215 = int_to_ptr.vmem [resolvable:$true] %s214
          %220 = dma.hbm_to_vmem [thread:$0]  %s213, 16384, %s215, [#allocation6], 256, 256, 16
        $region20: #{tpu_custom_call.1} parent=11 // pred_fallthru
          _
        // Predicated region
        $region21: #{tpu_custom_call.1} parent=11 // pred_check
          %p221 = pneg %p110
        $region22: #{tpu_custom_call.1} parent=11 // pred_check_branch
          %223 = sbr.rel (%p221) target = $region24
        $region23: #{tpu_custom_call.1} parent=11 // pred_region
          %225 = vsyncadd [#allocation9], 0
          %s226 = sshll.u32 %s3, 4
          %s227 = int_to_ptr.hbm [resolvable:$true] %s226
          %s228 = sshll.u32 [#allocation8], 4
          %s229 = int_to_ptr.vmem [resolvable:$true] %s228
          %234 = dma.hbm_to_vmem [thread:$0]  %s227, 16384, %s229, [#allocation9], 256, 256, 16
        $region24: #{tpu_custom_call.1} parent=11 // pred_fallthru
          _
        // Predicated region
        $region25: #{tpu_custom_call.1} parent=11 // pred_check
          %p235 = pneg %p131
        $region26: #{tpu_custom_call.1} parent=11 // pred_check_branch
          %237 = sbr.rel (%p235) target = $region28
        $region27: #{tpu_custom_call.1} parent=11 // pred_region
          %239 = vsyncadd [#allocation9], 0
          %s240 = sshll.u32 %s4, 4
          %s241 = int_to_ptr.hbm [resolvable:$true] %s240
          %s242 = sshll.u32 [#allocation10], 4
          %s243 = int_to_ptr.vmem [resolvable:$true] %s242
          %248 = dma.hbm_to_vmem [thread:$0]  %s241, 4096, %s243, [#allocation9], 64, 64, 4
        $region28: #{tpu_custom_call.1} parent=11 // pred_fallthru
          _
        // Predicated region
        $region29: #{tpu_custom_call.1} parent=11 // pred_check
          %p249 = pneg %p152
        $region30: #{tpu_custom_call.1} parent=11 // pred_check_branch
          %251 = sbr.rel (%p249) target = $region32
        $region31: #{tpu_custom_call.1} parent=11 // pred_region
          %253 = vsyncadd [#allocation12], 0
          %s255 = sshll.u32 %s5, 4
          %s256 = int_to_ptr.hbm [resolvable:$true] %s255
          %s257 = sshll.u32 [#allocation11], 4
          %s258 = int_to_ptr.vmem [resolvable:$true] %s257
          %260 = dma.hbm_to_vmem [thread:$0]  %s256, 512, %s258, [#allocation12]
        $region32: #{tpu_custom_call.1} parent=11 // pred_fallthru
          _
      $region12: #{tpu_custom_call.1} parent=5 // pred_fallthru
        _
      %p261 = scmp.lt.s32.totalorder %s21, 4
      // Predicated region
      $region33: #{tpu_custom_call.1} parent=5 // pred_check
        %p262 = pneg %p261
      $region34: #{tpu_custom_call.1} parent=5 // pred_check_branch
        %264 = sbr.rel (%p262) target = $region36
      $region35: #{tpu_custom_call.1} parent=5 // pred_region
        // Predicated region
        $region37: #{tpu_custom_call.1} parent=35 // pred_check
          %p265 = pneg %p41
        $region38: #{tpu_custom_call.1} parent=35 // pred_check_branch
          %267 = sbr.rel (%p265) target = $region40
        $region39: #{tpu_custom_call.1} parent=35 // pred_region
          %s268 = sand.u32 %s31, 1
          %s269 = scalar_lea.sflag [#allocation3], %s268
          %s270 = sand.u32 %s31, 1
          %s271 = smul.addr %s270, 8
          %s272 = scalar_lea.vmem [#allocation2], %s271
          %274 = vsyncadd %s269, 0
          %s275 = smul.addr %s21, 8
          %s276 = scalar_lea.hbm %s0, %s275
          %s278 = sshll.u32 %s276, 4
          %s279 = int_to_ptr.hbm [resolvable:$true] %s278
          %s280 = sshll.u32 %s272, 4
          %s281 = int_to_ptr.vmem [resolvable:$true] %s280
          %283 = dma.hbm_to_vmem [thread:$0]  %s279, 128, %s281, %s269
        $region40: #{tpu_custom_call.1} parent=35 // pred_fallthru
          _
      $region36: #{tpu_custom_call.1} parent=5 // pred_fallthru
        _
      %p284 = scmp.le.s32.totalorder 1, %s21
      %p285 = scmp.lt.s32.totalorder %s21, 5
      %p286 = pnand %p284, %p285
      %p287 = pneg %p286
      // Predicated region
      $region41: #{tpu_custom_call.1} parent=5 // pred_check
        _
      $region42: #{tpu_custom_call.1} parent=5 // pred_check_branch
        %289 = sbr.rel (%p286) target = $region44
      $region43: #{tpu_custom_call.1} parent=5 // pred_region
        %s290 = ssub.s32 %s21, 1
        %s291 = sand.u32 %s34, 1
        %s292 = scalar_lea.sflag [#allocation3], %s291
        %s293 = sand.u32 %s34, 1
        %s294 = smul.addr %s293, 8
        %s295 = scalar_lea.vmem [#allocation2], %s294
        // Predicated region
        $region45: #{tpu_custom_call.1} parent=43 // pred_check
          %p296 = pneg %p47
        $region46: #{tpu_custom_call.1} parent=43 // pred_check_branch
          %298 = sbr.rel (%p296) target = $region48
        $region47: #{tpu_custom_call.1} parent=43 // pred_region
          %300 = dma.done %s292, 128
        $region48: #{tpu_custom_call.1} parent=43 // pred_fallthru
          _
        // Predicated region
        $region49: #{tpu_custom_call.1} parent=43 // pred_check
          %p301 = pneg %p68
        $region50: #{tpu_custom_call.1} parent=43 // pred_check_branch
          %303 = sbr.rel (%p301) target = $region52
        $region51: #{tpu_custom_call.1} parent=43 // pred_region
          %305 = dma.done [#allocation6], 2048
        $region52: #{tpu_custom_call.1} parent=43 // pred_fallthru
          _
        // Predicated region
        $region53: #{tpu_custom_call.1} parent=43 // pred_check
          %p306 = pneg %p89
        $region54: #{tpu_custom_call.1} parent=43 // pred_check_branch
          %308 = sbr.rel (%p306) target = $region56
        $region55: #{tpu_custom_call.1} parent=43 // pred_region
          %310 = dma.done [#allocation6], 16384
        $region56: #{tpu_custom_call.1} parent=43 // pred_fallthru
          _
        // Predicated region
        $region57: #{tpu_custom_call.1} parent=43 // pred_check
          %p311 = pneg %p110
        $region58: #{tpu_custom_call.1} parent=43 // pred_check_branch
          %313 = sbr.rel (%p311) target = $region60
        $region59: #{tpu_custom_call.1} parent=43 // pred_region
          %315 = dma.done [#allocation9], 16384
        $region60: #{tpu_custom_call.1} parent=43 // pred_fallthru
          _
        // Predicated region
        $region61: #{tpu_custom_call.1} parent=43 // pred_check
          %p316 = pneg %p131
        $region62: #{tpu_custom_call.1} parent=43 // pred_check_branch
          %318 = sbr.rel (%p316) target = $region64
        $region63: #{tpu_custom_call.1} parent=43 // pred_region
          %320 = dma.done [#allocation9], 4096
        $region64: #{tpu_custom_call.1} parent=43 // pred_fallthru
          _
        // Predicated region
        $region65: #{tpu_custom_call.1} parent=43 // pred_check
          %p321 = pneg %p152
        $region66: #{tpu_custom_call.1} parent=43 // pred_check_branch
          %323 = sbr.rel (%p321) target = $region68
        $region67: #{tpu_custom_call.1} parent=43 // pred_region
          %325 = dma.done [#allocation12], 512
        $region68: #{tpu_custom_call.1} parent=43 // pred_fallthru
          _
        %s326 = sand.u32 %s34, 1
        %s327 = scalar_lea.sflag [#allocation3], %s326
        %s328 = sand.u32 %s34, 1
        %s329 = smul.addr %s328, 8
        %s330 = scalar_lea.vmem [#allocation2], %s329
        %p331 = pneg %p47
        %p332 = pneg %p44
        %p333 = pneg %p68
        %p334 = pneg %p65
        %p335 = pneg %p89
        %p336 = pneg %p86
        %p337 = pneg %p110
        %p338 = pneg %p107
        %p339 = pneg %p131
        %p340 = pneg %p128
        %p341 = pneg %p152
        %p342 = pneg %p149
        %p343 = pneg %p178
        %p344 = pneg %p175
        %s345 = sand.u32 %s165, 1
        %s346 = scalar_lea.sflag [#allocation4], %s345
        %s347 = sand.u32 %s165, 1
        %s348 = smul.addr %s347, 8
        %s349 = scalar_lea.vmem [#allocation13], %s348
        %v351 = vld [vmem:[#allocation11] sm:$0xff]
        %v352 = vld [vmem:[#allocation11 + $0x8] sm:$0xff]
        %v353 = vld [vmem:[#allocation11 + $0x10] sm:$0xff]
        %v354 = vld [vmem:[#allocation11 + $0x18] sm:$0xff]
        %v355 = vld [vmem:[%s295] sm:$0xff]
        %v356 = vpack.c.bf16 %v355, %v355
        %v357 = vld [vmem:[#allocation5] sm:$0xff]
        %v358 = vld [vmem:[#allocation5 + $0x8] sm:$0xff]
        %v359 = vld [vmem:[#allocation5 + $0x10] sm:$0xff]
        %v360 = vld [vmem:[#allocation5 + $0x18] sm:$0xff]
        %v361 = vld [vmem:[#allocation5 + $0x20] sm:$0xff]
        %v362 = vld [vmem:[#allocation5 + $0x28] sm:$0xff]
        %v363 = vld [vmem:[#allocation5 + $0x30] sm:$0xff]
        %v364 = vld [vmem:[#allocation5 + $0x38] sm:$0xff]
        %v365 = vld [vmem:[#allocation5 + $0x40] sm:$0xff]
        %v366 = vld [vmem:[#allocation5 + $0x48] sm:$0xff]
        %v367 = vld [vmem:[#allocation5 + $0x50] sm:$0xff]
        %v368 = vld [vmem:[#allocation5 + $0x58] sm:$0xff]
        %v369 = vld [vmem:[#allocation5 + $0x60] sm:$0xff]
        %v370 = vld [vmem:[#allocation5 + $0x68] sm:$0xff]
        %v371 = vld [vmem:[#allocation5 + $0x70] sm:$0xff]
        %v372 = vld [vmem:[#allocation5 + $0x78] sm:$0xff]
        %v389 = vunpack.c.l.b16 %v357
        %v390 = vunpack.c.h.b16 %v357
        %v391 = vunpack.c.l.b16 %v358
        %v392 = vunpack.c.h.b16 %v358
        %v393 = vunpack.c.l.b16 %v359
        %v394 = vunpack.c.h.b16 %v359
        %v395 = vunpack.c.l.b16 %v360
        %v396 = vunpack.c.h.b16 %v360
        %v397 = vunpack.c.l.b16 %v361
        %v398 = vunpack.c.h.b16 %v361
        %v399 = vunpack.c.l.b16 %v362
        %v400 = vunpack.c.h.b16 %v362
        %v401 = vunpack.c.l.b16 %v363
        %v402 = vunpack.c.h.b16 %v363
        %v403 = vunpack.c.l.b16 %v364
        %v404 = vunpack.c.h.b16 %v364
        %v405 = vunpack.c.l.b16 %v365
        %v406 = vunpack.c.h.b16 %v365
        %v407 = vunpack.c.l.b16 %v366
        %v408 = vunpack.c.h.b16 %v366
        %v409 = vunpack.c.l.b16 %v367
        %v410 = vunpack.c.h.b16 %v367
        %v411 = vunpack.c.l.b16 %v368
        %v412 = vunpack.c.h.b16 %v368
        %v413 = vunpack.c.l.b16 %v369
        %v414 = vunpack.c.h.b16 %v369
        %v415 = vunpack.c.l.b16 %v370
        %v416 = vunpack.c.h.b16 %v370
        %v417 = vunpack.c.l.b16 %v371
        %v418 = vunpack.c.h.b16 %v371
        %v419 = vunpack.c.l.b16 %v372
        %v420 = vunpack.c.h.b16 %v372
        %v421 = vpack.c.b16 %v393, %v389
        %v422 = vpack.c.b16 %v394, %v390
        %v423 = vpack.c.b16 %v395, %v391
        %v424 = vpack.c.b16 %v396, %v392
        %v425 = vpack.c.b16 %v401, %v397
        %v426 = vpack.c.b16 %v402, %v398
        %v427 = vpack.c.b16 %v403, %v399
        %v428 = vpack.c.b16 %v404, %v400
        %v429 = vpack.c.b16 %v409, %v405
        %v430 = vpack.c.b16 %v410, %v406
        %v431 = vpack.c.b16 %v411, %v407
        %v432 = vpack.c.b16 %v412, %v408
        %v433 = vpack.c.b16 %v417, %v413
        %v434 = vpack.c.b16 %v418, %v414
        %v435 = vpack.c.b16 %v419, %v415
        %v436 = vpack.c.b16 %v420, %v416
        %vm453 = vcmask 523264
        %v455 = vsel %vm453, %v356, 0
        %457 = vmatpush.bf16.msra.mxu0 0
        %458 = vmatpush.bf16.msra.mxu0 0
        %459 = vmatpush.bf16.msra.mxu0 0
        %460 = vmatpush.bf16.msra.mxu0 0
        %461 = vmatpush.bf16.msra.mxu0 %v433
        %462 = vmatpush.bf16.msra.mxu0 %v429
        %463 = vmatpush.bf16.msra.mxu0 %v425
        %464 = vmatpush.bf16.msra.mxu0 %v421
        %465 = vmatmul.bf16.gmra.mxu0 %v455
        %v466 = vpop.f32.mrf.mxu0
        %v467 = vadd.f32 0.0, %v466
        %v468 = vpop.f32.mrf.mxu0
        %469 = vdwg.mxu0
        %470 = vmatpush.bf16.msra.mxu0 0
        %471 = vmatpush.bf16.msra.mxu0 0
        %472 = vmatpush.bf16.msra.mxu0 0
        %473 = vmatpush.bf16.msra.mxu0 0
        %474 = vmatpush.bf16.msra.mxu0 %v434
        %475 = vmatpush.bf16.msra.mxu0 %v430
        %476 = vmatpush.bf16.msra.mxu0 %v426
        %477 = vmatpush.bf16.msra.mxu0 %v422
        %478 = vmatmul.bf16.gmra.mxu0 %v455
        %v479 = vpop.f32.mrf.mxu0
        %v480 = vadd.f32 0.0, %v479
        %v481 = vpop.f32.mrf.mxu0
        %482 = vdwg.mxu0
        %483 = vmatpush.bf16.msra.mxu0 0
        %484 = vmatpush.bf16.msra.mxu0 0
        %485 = vmatpush.bf16.msra.mxu0 0
        %486 = vmatpush.bf16.msra.mxu0 0
        %487 = vmatpush.bf16.msra.mxu0 %v435
        %488 = vmatpush.bf16.msra.mxu0 %v431
        %489 = vmatpush.bf16.msra.mxu0 %v427
        %490 = vmatpush.bf16.msra.mxu0 %v423
        %491 = vmatmul.bf16.gmra.mxu0 %v455
        %v492 = vpop.f32.mrf.mxu0
        %v493 = vadd.f32 0.0, %v492
        %v494 = vpop.f32.mrf.mxu0
        %495 = vdwg.mxu0
        %496 = vmatpush.bf16.msra.mxu0 0
        %497 = vmatpush.bf16.msra.mxu0 0
        %498 = vmatpush.bf16.msra.mxu0 0
        %499 = vmatpush.bf16.msra.mxu0 0
        %500 = vmatpush.bf16.msra.mxu0 %v436
        %501 = vmatpush.bf16.msra.mxu0 %v432
        %502 = vmatpush.bf16.msra.mxu0 %v428
        %503 = vmatpush.bf16.msra.mxu0 %v424
        %504 = vmatmul.bf16.gmra.mxu0 %v455
        %v505 = vpop.f32.mrf.mxu0
        %v506 = vadd.f32 0.0, %v505
        %v507 = vpop.f32.mrf.mxu0
        %508 = vdwg.mxu0
        %v509 = vrot.slane %v467, 4
        %v510 = vadd.f32 %v467, %v509
        %v511 = vrot.slane %v510, 2
        %v512 = vadd.f32 %v510, %v511
        %v513 = vrot.slane %v512, 1
        %v514 = vadd.f32 %v512, %v513
        %v515 = vrot.slane %v480, 4
        %v516 = vadd.f32 %v480, %v515
        %v517 = vrot.slane %v516, 2
        %v518 = vadd.f32 %v516, %v517
        %v519 = vrot.slane %v518, 1
        %v520 = vadd.f32 %v518, %v519
        %v521 = vrot.slane %v493, 4
        %v522 = vadd.f32 %v493, %v521
        %v523 = vrot.slane %v522, 2
        %v524 = vadd.f32 %v522, %v523
        %v525 = vrot.slane %v524, 1
        %v526 = vadd.f32 %v524, %v525
        %v527 = vrot.slane %v506, 4
        %v528 = vadd.f32 %v506, %v527
        %v529 = vrot.slane %v528, 2
        %v530 = vadd.f32 %v528, %v529
        %v531 = vrot.slane %v530, 1
        %v532 = vadd.f32 %v530, %v531
        %v533 = vrcp.pop 8.0
        %v534 = vmul.f32 8.0, %v533
        %v535 = vsub.f32 1.0, %v534
        %v536 = vmul.f32 %v533, %v535
        %v537 = vadd.f32 %v533, %v536
        %vm538 = vweird.f32 %v533
        %v539 = vsel %vm538, %v533, %v537
        %v540 = vmul.f32 %v514, %v539
        %v541 = vmul.f32 %v520, %v539
        %v542 = vmul.f32 %v526, %v539
        %v543 = vmul.f32 %v532, %v539
        %v544 = vmul.f32 %v467, %v467
        %v545 = vmul.f32 %v480, %v480
        %v546 = vmul.f32 %v493, %v493
        %v547 = vmul.f32 %v506, %v506
        %v548 = vrot.slane %v544, 4
        %v549 = vadd.f32 %v544, %v548
        %v550 = vrot.slane %v549, 2
        %v551 = vadd.f32 %v549, %v550
        %v552 = vrot.slane %v551, 1
        %v553 = vadd.f32 %v551, %v552
        %v554 = vrot.slane %v545, 4
        %v555 = vadd.f32 %v545, %v554
        %v556 = vrot.slane %v555, 2
        %v557 = vadd.f32 %v555, %v556
        %v558 = vrot.slane %v557, 1
        %v559 = vadd.f32 %v557, %v558
        %v560 = vrot.slane %v546, 4
        %v561 = vadd.f32 %v546, %v560
        %v562 = vrot.slane %v561, 2
        %v563 = vadd.f32 %v561, %v562
        %v564 = vrot.slane %v563, 1
        %v565 = vadd.f32 %v563, %v564
        %v566 = vrot.slane %v547, 4
        %v567 = vadd.f32 %v547, %v566
        %v568 = vrot.slane %v567, 2
        %v569 = vadd.f32 %v567, %v568
        %v570 = vrot.slane %v569, 1
        %v571 = vadd.f32 %v569, %v570
        %v572 = vmul.f32 %v553, %v539
        %v573 = vmul.f32 %v559, %v539
        %v574 = vmul.f32 %v565, %v539
        %v575 = vmul.f32 %v571, %v539
        %v576 = vmul.f32 %v540, %v540
        %v577 = vmul.f32 %v541, %v541
        %v578 = vmul.f32 %v542, %v542
        %v579 = vmul.f32 %v543, %v543
        %v580 = vsub.f32 %v572, %v576
        %v581 = vsub.f32 %v573, %v577
        %v582 = vsub.f32 %v574, %v578
        %v583 = vsub.f32 %v575, %v579
        %v584 = vmax.f32 %v580, 0.0
        %v585 = vmax.f32 %v581, 0.0
        %v586 = vmax.f32 %v582, 0.0
        %v587 = vmax.f32 %v583, 0.0
        %v588 = vadd.f32 %v584, 1e-05
        %v589 = vadd.f32 %v585, 1e-05
        %v590 = vadd.f32 %v586, 1e-05
        %v591 = vadd.f32 %v587, 1e-05
        %v592 = vrsqrt.pop %v588
        %v593 = vmul.f32 %v592, %v588
        %v594 = vmul.f32 %v593, %v592
        %v595 = vmul.f32 0.5, %v594
        %v596 = vsub.f32 1.5, %v595
        %v597 = vmul.f32 %v592, %v596
        %vm598 = vweird.f32 %v588
        %vm599 = vweird.f32 %v592
        %vm600 = vmor %vm598, %vm599
        %v601 = vsel %vm600, %v592, %v597
        %v602 = vrsqrt.pop %v589
        %v603 = vmul.f32 %v602, %v589
        %v604 = vmul.f32 %v603, %v602
        %v605 = vmul.f32 0.5, %v604
        %v606 = vsub.f32 1.5, %v605
        %v607 = vmul.f32 %v602, %v606
        %vm608 = vweird.f32 %v589
        %vm609 = vweird.f32 %v602
        %vm610 = vmor %vm608, %vm609
        %v611 = vsel %vm610, %v602, %v607
        %v612 = vrsqrt.pop %v590
        %v613 = vmul.f32 %v612, %v590
        %v614 = vmul.f32 %v613, %v612
        %v615 = vmul.f32 0.5, %v614
        %v616 = vsub.f32 1.5, %v615
        %v617 = vmul.f32 %v612, %v616
        %vm618 = vweird.f32 %v590
        %vm619 = vweird.f32 %v612
        %vm620 = vmor %vm618, %vm619
        %v621 = vsel %vm620, %v612, %v617
        %v622 = vrsqrt.pop %v591
        %v623 = vmul.f32 %v622, %v591
        %v624 = vmul.f32 %v623, %v622
        %v625 = vmul.f32 0.5, %v624
        %v626 = vsub.f32 1.5, %v625
        %v627 = vmul.f32 %v622, %v626
        %vm628 = vweird.f32 %v591
        %vm629 = vweird.f32 %v622
        %vm630 = vmor %vm628, %vm629
        %v631 = vsel %vm630, %v622, %v627
        %v632 = vmul.f32 %v351, %v601
        %v633 = vmul.f32 %v352, %v611
        %v634 = vmul.f32 %v353, %v621
        %v635 = vmul.f32 %v354, %v631
        %v636 = vmul.f32 %v540, %v632
        %v637 = vmul.f32 %v541, %v633
        %v638 = vmul.f32 %v542, %v634
        %v639 = vmul.f32 %v543, %v635
        %v644 = vrot.slane %v636, 7
        %v645 = vrot.slane %v637, 7
        %v646 = vrot.slane %v638, 7
        %v647 = vrot.slane %v639, 7
        %v652 = vsub.f32 %v351, %v644
        %v653 = vsub.f32 %v352, %v645
        %v654 = vsub.f32 %v353, %v646
        %v655 = vsub.f32 %v354, %v647
        %v656 = vperm.slane %v632, 0
        %v657 = vperm.slane %v633, 0
        %v658 = vperm.slane %v634, 0
        %v659 = vperm.slane %v635, 0
        %v660 = vmul.f32 %v467, %v656
        %v661 = vmul.f32 %v480, %v657
        %v662 = vmul.f32 %v493, %v658
        %v663 = vmul.f32 %v506, %v659
        %v664 = vperm.slane %v652, 1
        %v665 = vperm.slane %v653, 1
        %v666 = vperm.slane %v654, 1
        %v667 = vperm.slane %v655, 1
        %v668 = vadd.f32 %v660, %v664
        %v669 = vadd.f32 %v661, %v665
        %v670 = vadd.f32 %v662, %v666
        %v671 = vadd.f32 %v663, %v667
        %v672 = vmul.f32 %v668, 0.01
        %v673 = vmul.f32 %v669, 0.01
        %v674 = vmul.f32 %v670, 0.01
        %v675 = vmul.f32 %v671, 0.01
        %v676 = vmax.f32 %v668, %v672
        %v677 = vmax.f32 %v669, %v673
        %v678 = vmax.f32 %v670, %v674
        %v679 = vmax.f32 %v671, %v675
        %v680 = vpack.c.bf16 %v676, %v676
        %v681 = vpack.c.bf16 %v677, %v677
        %v682 = vpack.c.bf16 %v678, %v678
        %v683 = vpack.c.bf16 %v679, %v679
        %v684 = vld [vmem:[#allocation7] sm:$0xff]
        %v685 = vld [vmem:[#allocation7 + $0x8] sm:$0xff]
        %v686 = vld [vmem:[#allocation7 + $0x10] sm:$0xff]
        %v687 = vld [vmem:[#allocation7 + $0x18] sm:$0xff]
        %v688 = vld [vmem:[#allocation7 + $0x20] sm:$0xff]
        %v689 = vld [vmem:[#allocation7 + $0x28] sm:$0xff]
        %v690 = vld [vmem:[#allocation7 + $0x30] sm:$0xff]
        %v691 = vld [vmem:[#allocation7 + $0x38] sm:$0xff]
        %v692 = vld [vmem:[#allocation7 + $0x40] sm:$0xff]
        %v693 = vld [vmem:[#allocation7 + $0x48] sm:$0xff]
        %v694 = vld [vmem:[#allocation7 + $0x50] sm:$0xff]
        %v695 = vld [vmem:[#allocation7 + $0x58] sm:$0xff]
        %v696 = vld [vmem:[#allocation7 + $0x60] sm:$0xff]
        %v697 = vld [vmem:[#allocation7 + $0x68] sm:$0xff]
        %v698 = vld [vmem:[#allocation7 + $0x70] sm:$0xff]
        %v699 = vld [vmem:[#allocation7 + $0x78] sm:$0xff]
        %v700 = vld [vmem:[#allocation7 + $0x80] sm:$0xff]
        %v701 = vld [vmem:[#allocation7 + $0x88] sm:$0xff]
        %v702 = vld [vmem:[#allocation7 + $0x90] sm:$0xff]
        %v703 = vld [vmem:[#allocation7 + $0x98] sm:$0xff]
        %v704 = vld [vmem:[#allocation7 + $0xa0] sm:$0xff]
        %v705 = vld [vmem:[#allocation7 + $0xa8] sm:$0xff]
        %v706 = vld [vmem:[#allocation7 + $0xb0] sm:$0xff]
        %v707 = vld [vmem:[#allocation7 + $0xb8] sm:$0xff]
        %v708 = vld [vmem:[#allocation7 + $0xc0] sm:$0xff]
        %v709 = vld [vmem:[#allocation7 + $0xc8] sm:$0xff]
        %v710 = vld [vmem:[#allocation7 + $0xd0] sm:$0xff]
        %v711 = vld [vmem:[#allocation7 + $0xd8] sm:$0xff]
        %v712 = vld [vmem:[#allocation7 + $0xe0] sm:$0xff]
        %v713 = vld [vmem:[#allocation7 + $0xe8] sm:$0xff]
        %v714 = vld [vmem:[#allocation7 + $0xf0] sm:$0xff]
        %v715 = vld [vmem:[#allocation7 + $0xf8] sm:$0xff]
        %v716 = vld [vmem:[#allocation7 + $0x100] sm:$0xff]
        %v717 = vld [vmem:[#allocation7 + $0x108] sm:$0xff]
        %v718 = vld [vmem:[#allocation7 + $0x110] sm:$0xff]
        %v719 = vld [vmem:[#allocation7 + $0x118] sm:$0xff]
        %v720 = vld [vmem:[#allocation7 + $0x120] sm:$0xff]
        %v721 = vld [vmem:[#allocation7 + $0x128] sm:$0xff]
        %v722 = vld [vmem:[#allocation7 + $0x130] sm:$0xff]
        %v723 = vld [vmem:[#allocation7 + $0x138] sm:$0xff]
        %v724 = vld [vmem:[#allocation7 + $0x140] sm:$0xff]
        %v725 = vld [vmem:[#allocation7 + $0x148] sm:$0xff]
        %v726 = vld [vmem:[#allocation7 + $0x150] sm:$0xff]
        %v727 = vld [vmem:[#allocation7 + $0x158] sm:$0xff]
        %v728 = vld [vmem:[#allocation7 + $0x160] sm:$0xff]
        %v729 = vld [vmem:[#allocation7 + $0x168] sm:$0xff]
        %v730 = vld [vmem:[#allocation7 + $0x170] sm:$0xff]
        %v731 = vld [vmem:[#allocation7 + $0x178] sm:$0xff]
        %v732 = vld [vmem:[#allocation7 + $0x180] sm:$0xff]
        %v733 = vld [vmem:[#allocation7 + $0x188] sm:$0xff]
        %v734 = vld [vmem:[#allocation7 + $0x190] sm:$0xff]
        %v735 = vld [vmem:[#allocation7 + $0x198] sm:$0xff]
        %v736 = vld [vmem:[#allocation7 + $0x1a0] sm:$0xff]
        %v737 = vld [vmem:[#allocation7 + $0x1a8] sm:$0xff]
        %v738 = vld [vmem:[#allocation7 + $0x1b0] sm:$0xff]
        %v739 = vld [vmem:[#allocation7 + $0x1b8] sm:$0xff]
        %v740 = vld [vmem:[#allocation7 + $0x1c0] sm:$0xff]
        %v741 = vld [vmem:[#allocation7 + $0x1c8] sm:$0xff]
        %v742 = vld [vmem:[#allocation7 + $0x1d0] sm:$0xff]
        %v743 = vld [vmem:[#allocation7 + $0x1d8] sm:$0xff]
        %v744 = vld [vmem:[#allocation7 + $0x1e0] sm:$0xff]
        %v745 = vld [vmem:[#allocation7 + $0x1e8] sm:$0xff]
        %v746 = vld [vmem:[#allocation7 + $0x1f0] sm:$0xff]
        %v747 = vld [vmem:[#allocation7 + $0x1f8] sm:$0xff]
        %v748 = vld [vmem:[#allocation7 + $0x200] sm:$0xff]
        %v749 = vld [vmem:[#allocation7 + $0x208] sm:$0xff]
        %v750 = vld [vmem:[#allocation7 + $0x210] sm:$0xff]
        %v751 = vld [vmem:[#allocation7 + $0x218] sm:$0xff]
        %v752 = vld [vmem:[#allocation7 + $0x220] sm:$0xff]
        %v753 = vld [vmem:[#allocation7 + $0x228] sm:$0xff]
        %v754 = vld [vmem:[#allocation7 + $0x230] sm:$0xff]
        %v755 = vld [vmem:[#allocation7 + $0x238] sm:$0xff]
        %v756 = vld [vmem:[#allocation7 + $0x240] sm:$0xff]
        %v757 = vld [vmem:[#allocation7 + $0x248] sm:$0xff]
        %v758 = vld [vmem:[#allocation7 + $0x250] sm:$0xff]
        %v759 = vld [vmem:[#allocation7 + $0x258] sm:$0xff]
        %v760 = vld [vmem:[#allocation7 + $0x260] sm:$0xff]
        %v761 = vld [vmem:[#allocation7 + $0x268] sm:$0xff]
        %v762 = vld [vmem:[#allocation7 + $0x270] sm:$0xff]
        %v763 = vld [vmem:[#allocation7 + $0x278] sm:$0xff]
        %v764 = vld [vmem:[#allocation7 + $0x280] sm:$0xff]
        %v765 = vld [vmem:[#allocation7 + $0x288] sm:$0xff]
        %v766 = vld [vmem:[#allocation7 + $0x290] sm:$0xff]
        %v767 = vld [vmem:[#allocation7 + $0x298] sm:$0xff]
        %v768 = vld [vmem:[#allocation7 + $0x2a0] sm:$0xff]
        %v769 = vld [vmem:[#allocation7 + $0x2a8] sm:$0xff]
        %v770 = vld [vmem:[#allocation7 + $0x2b0] sm:$0xff]
        %v771 = vld [vmem:[#allocation7 + $0x2b8] sm:$0xff]
        %v772 = vld [vmem:[#allocation7 + $0x2c0] sm:$0xff]
        %v773 = vld [vmem:[#allocation7 + $0x2c8] sm:$0xff]
        %v774 = vld [vmem:[#allocation7 + $0x2d0] sm:$0xff]
        %v775 = vld [vmem:[#allocation7 + $0x2d8] sm:$0xff]
        %v776 = vld [vmem:[#allocation7 + $0x2e0] sm:$0xff]
        %v777 = vld [vmem:[#allocation7 + $0x2e8] sm:$0xff]
        %v778 = vld [vmem:[#allocation7 + $0x2f0] sm:$0xff]
        %v779 = vld [vmem:[#allocation7 + $0x2f8] sm:$0xff]
        %v780 = vld [vmem:[#allocation7 + $0x300] sm:$0xff]
        %v781 = vld [vmem:[#allocation7 + $0x308] sm:$0xff]
        %v782 = vld [vmem:[#allocation7 + $0x310] sm:$0xff]
        %v783 = vld [vmem:[#allocation7 + $0x318] sm:$0xff]
        %v784 = vld [vmem:[#allocation7 + $0x320] sm:$0xff]
        %v785 = vld [vmem:[#allocation7 + $0x328] sm:$0xff]
        %v786 = vld [vmem:[#allocation7 + $0x330] sm:$0xff]
        %v787 = vld [vmem:[#allocation7 + $0x338] sm:$0xff]
        %v788 = vld [vmem:[#allocation7 + $0x340] sm:$0xff]
        %v789 = vld [vmem:[#allocation7 + $0x348] sm:$0xff]
        %v790 = vld [vmem:[#allocation7 + $0x350] sm:$0xff]
        %v791 = vld [vmem:[#allocation7 + $0x358] sm:$0xff]
        %v792 = vld [vmem:[#allocation7 + $0x360] sm:$0xff]
        %v793 = vld [vmem:[#allocation7 + $0x368] sm:$0xff]
        %v794 = vld [vmem:[#allocation7 + $0x370] sm:$0xff]
        %v795 = vld [vmem:[#allocation7 + $0x378] sm:$0xff]
        %v796 = vld [vmem:[#allocation7 + $0x380] sm:$0xff]
        %v797 = vld [vmem:[#allocation7 + $0x388] sm:$0xff]
        %v798 = vld [vmem:[#allocation7 + $0x390] sm:$0xff]
        %v799 = vld [vmem:[#allocation7 + $0x398] sm:$0xff]
        %v800 = vld [vmem:[#allocation7 + $0x3a0] sm:$0xff]
        %v801 = vld [vmem:[#allocation7 + $0x3a8] sm:$0xff]
        %v802 = vld [vmem:[#allocation7 + $0x3b0] sm:$0xff]
        %v803 = vld [vmem:[#allocation7 + $0x3b8] sm:$0xff]
        %v804 = vld [vmem:[#allocation7 + $0x3c0] sm:$0xff]
        %v805 = vld [vmem:[#allocation7 + $0x3c8] sm:$0xff]
        %v806 = vld [vmem:[#allocation7 + $0x3d0] sm:$0xff]
        %v807 = vld [vmem:[#allocation7 + $0x3d8] sm:$0xff]
        %v808 = vld [vmem:[#allocation7 + $0x3e0] sm:$0xff]
        %v809 = vld [vmem:[#allocation7 + $0x3e8] sm:$0xff]
        %v810 = vld [vmem:[#allocation7 + $0x3f0] sm:$0xff]
        %v811 = vld [vmem:[#allocation7 + $0x3f8] sm:$0xff]
        %v940 = vunpack.c.l.b16 %v684
        %v941 = vunpack.c.h.b16 %v684
        %v942 = vunpack.c.l.b16 %v685
        %v943 = vunpack.c.h.b16 %v685
        %v944 = vunpack.c.l.b16 %v686
        %v945 = vunpack.c.h.b16 %v686
        %v946 = vunpack.c.l.b16 %v687
        %v947 = vunpack.c.h.b16 %v687
        %v948 = vunpack.c.l.b16 %v688
        %v949 = vunpack.c.h.b16 %v688
        %v950 = vunpack.c.l.b16 %v689
        %v951 = vunpack.c.h.b16 %v689
        %v952 = vunpack.c.l.b16 %v690
        %v953 = vunpack.c.h.b16 %v690
        %v954 = vunpack.c.l.b16 %v691
        %v955 = vunpack.c.h.b16 %v691
        %v956 = vunpack.c.l.b16 %v692
        %v957 = vunpack.c.h.b16 %v692
        %v958 = vunpack.c.l.b16 %v693
        %v959 = vunpack.c.h.b16 %v693
        %v960 = vunpack.c.l.b16 %v694
        %v961 = vunpack.c.h.b16 %v694
        %v962 = vunpack.c.l.b16 %v695
        %v963 = vunpack.c.h.b16 %v695
        %v964 = vunpack.c.l.b16 %v696
        %v965 = vunpack.c.h.b16 %v696
        %v966 = vunpack.c.l.b16 %v697
        %v967 = vunpack.c.h.b16 %v697
        %v968 = vunpack.c.l.b16 %v698
        %v969 = vunpack.c.h.b16 %v698
        %v970 = vunpack.c.l.b16 %v699
        %v971 = vunpack.c.h.b16 %v699
        %v972 = vunpack.c.l.b16 %v700
        %v973 = vunpack.c.h.b16 %v700
        %v974 = vunpack.c.l.b16 %v701
        %v975 = vunpack.c.h.b16 %v701
        %v976 = vunpack.c.l.b16 %v702
        %v977 = vunpack.c.h.b16 %v702
        %v978 = vunpack.c.l.b16 %v703
        %v979 = vunpack.c.h.b16 %v703
        %v980 = vunpack.c.l.b16 %v704
        %v981 = vunpack.c.h.b16 %v704
        %v982 = vunpack.c.l.b16 %v705
        %v983 = vunpack.c.h.b16 %v705
        %v984 = vunpack.c.l.b16 %v706
        %v985 = vunpack.c.h.b16 %v706
        %v986 = vunpack.c.l.b16 %v707
        %v987 = vunpack.c.h.b16 %v707
        %v988 = vunpack.c.l.b16 %v708
        %v989 = vunpack.c.h.b16 %v708
        %v990 = vunpack.c.l.b16 %v709
        %v991 = vunpack.c.h.b16 %v709
        %v992 = vunpack.c.l.b16 %v710
        %v993 = vunpack.c.h.b16 %v710
        %v994 = vunpack.c.l.b16 %v711
        %v995 = vunpack.c.h.b16 %v711
        %v996 = vunpack.c.l.b16 %v712
        %v997 = vunpack.c.h.b16 %v712
        %v998 = vunpack.c.l.b16 %v713
        %v999 = vunpack.c.h.b16 %v713
        %v1000 = vunpack.c.l.b16 %v714
        %v1001 = vunpack.c.h.b16 %v714
        %v1002 = vunpack.c.l.b16 %v715
        %v1003 = vunpack.c.h.b16 %v715
        %v1004 = vunpack.c.l.b16 %v716
        %v1005 = vunpack.c.h.b16 %v716
        %v1006 = vunpack.c.l.b16 %v717
        %v1007 = vunpack.c.h.b16 %v717
        %v1008 = vunpack.c.l.b16 %v718
        %v1009 = vunpack.c.h.b16 %v718
        %v1010 = vunpack.c.l.b16 %v719
        %v1011 = vunpack.c.h.b16 %v719
        %v1012 = vunpack.c.l.b16 %v720
        %v1013 = vunpack.c.h.b16 %v720
        %v1014 = vunpack.c.l.b16 %v721
        %v1015 = vunpack.c.h.b16 %v721
        %v1016 = vunpack.c.l.b16 %v722
        %v1017 = vunpack.c.h.b16 %v722
        %v1018 = vunpack.c.l.b16 %v723
        %v1019 = vunpack.c.h.b16 %v723
        %v1020 = vunpack.c.l.b16 %v724
        %v1021 = vunpack.c.h.b16 %v724
        %v1022 = vunpack.c.l.b16 %v725
        %v1023 = vunpack.c.h.b16 %v725
        %v1024 = vunpack.c.l.b16 %v726
        %v1025 = vunpack.c.h.b16 %v726
        %v1026 = vunpack.c.l.b16 %v727
        %v1027 = vunpack.c.h.b16 %v727
        %v1028 = vunpack.c.l.b16 %v728
        %v1029 = vunpack.c.h.b16 %v728
        %v1030 = vunpack.c.l.b16 %v729
        %v1031 = vunpack.c.h.b16 %v729
        %v1032 = vunpack.c.l.b16 %v730
        %v1033 = vunpack.c.h.b16 %v730
        %v1034 = vunpack.c.l.b16 %v731
        %v1035 = vunpack.c.h.b16 %v731
        %v1036 = vunpack.c.l.b16 %v732
        %v1037 = vunpack.c.h.b16 %v732
        %v1038 = vunpack.c.l.b16 %v733
        %v1039 = vunpack.c.h.b16 %v733
        %v1040 = vunpack.c.l.b16 %v734
        %v1041 = vunpack.c.h.b16 %v734
        %v1042 = vunpack.c.l.b16 %v735
        %v1043 = vunpack.c.h.b16 %v735
        %v1044 = vunpack.c.l.b16 %v736
        %v1045 = vunpack.c.h.b16 %v736
        %v1046 = vunpack.c.l.b16 %v737
        %v1047 = vunpack.c.h.b16 %v737
        %v1048 = vunpack.c.l.b16 %v738
        %v1049 = vunpack.c.h.b16 %v738
        %v1050 = vunpack.c.l.b16 %v739
        %v1051 = vunpack.c.h.b16 %v739
        %v1052 = vunpack.c.l.b16 %v740
        %v1053 = vunpack.c.h.b16 %v740
        %v1054 = vunpack.c.l.b16 %v741
        %v1055 = vunpack.c.h.b16 %v741
        %v1056 = vunpack.c.l.b16 %v742
        %v1057 = vunpack.c.h.b16 %v742
        %v1058 = vunpack.c.l.b16 %v743
        %v1059 = vunpack.c.h.b16 %v743
        %v1060 = vunpack.c.l.b16 %v744
        %v1061 = vunpack.c.h.b16 %v744
        %v1062 = vunpack.c.l.b16 %v745
        %v1063 = vunpack.c.h.b16 %v745
        %v1064 = vunpack.c.l.b16 %v746
        %v1065 = vunpack.c.h.b16 %v746
        %v1066 = vunpack.c.l.b16 %v747
        %v1067 = vunpack.c.h.b16 %v747
        %v1068 = vunpack.c.l.b16 %v748
        %v1069 = vunpack.c.h.b16 %v748
        %v1070 = vunpack.c.l.b16 %v749
        %v1071 = vunpack.c.h.b16 %v749
        %v1072 = vunpack.c.l.b16 %v750
        %v1073 = vunpack.c.h.b16 %v750
        %v1074 = vunpack.c.l.b16 %v751
        %v1075 = vunpack.c.h.b16 %v751
        %v1076 = vunpack.c.l.b16 %v752
        %v1077 = vunpack.c.h.b16 %v752
        %v1078 = vunpack.c.l.b16 %v753
        %v1079 = vunpack.c.h.b16 %v753
        %v1080 = vunpack.c.l.b16 %v754
        %v1081 = vunpack.c.h.b16 %v754
        %v1082 = vunpack.c.l.b16 %v755
        %v1083 = vunpack.c.h.b16 %v755
        %v1084 = vunpack.c.l.b16 %v756
        %v1085 = vunpack.c.h.b16 %v756
        %v1086 = vunpack.c.l.b16 %v757
        %v1087 = vunpack.c.h.b16 %v757
        %v1088 = vunpack.c.l.b16 %v758
        %v1089 = vunpack.c.h.b16 %v758
        %v1090 = vunpack.c.l.b16 %v759
        %v1091 = vunpack.c.h.b16 %v759
        %v1092 = vunpack.c.l.b16 %v760
        %v1093 = vunpack.c.h.b16 %v760
        %v1094 = vunpack.c.l.b16 %v761
        %v1095 = vunpack.c.h.b16 %v761
        %v1096 = vunpack.c.l.b16 %v762
        %v1097 = vunpack.c.h.b16 %v762
        %v1098 = vunpack.c.l.b16 %v763
        %v1099 = vunpack.c.h.b16 %v763
        %v1100 = vunpack.c.l.b16 %v764
        %v1101 = vunpack.c.h.b16 %v764
        %v1102 = vunpack.c.l.b16 %v765
        %v1103 = vunpack.c.h.b16 %v765
        %v1104 = vunpack.c.l.b16 %v766
        %v1105 = vunpack.c.h.b16 %v766
        %v1106 = vunpack.c.l.b16 %v767
        %v1107 = vunpack.c.h.b16 %v767
        %v1108 = vunpack.c.l.b16 %v768
        %v1109 = vunpack.c.h.b16 %v768
        %v1110 = vunpack.c.l.b16 %v769
        %v1111 = vunpack.c.h.b16 %v769
        %v1112 = vunpack.c.l.b16 %v770
        %v1113 = vunpack.c.h.b16 %v770
        %v1114 = vunpack.c.l.b16 %v771
        %v1115 = vunpack.c.h.b16 %v771
        %v1116 = vunpack.c.l.b16 %v772
        %v1117 = vunpack.c.h.b16 %v772
        %v1118 = vunpack.c.l.b16 %v773
        %v1119 = vunpack.c.h.b16 %v773
        %v1120 = vunpack.c.l.b16 %v774
        %v1121 = vunpack.c.h.b16 %v774
        %v1122 = vunpack.c.l.b16 %v775
        %v1123 = vunpack.c.h.b16 %v775
        %v1124 = vunpack.c.l.b16 %v776
        %v1125 = vunpack.c.h.b16 %v776
        %v1126 = vunpack.c.l.b16 %v777
        %v1127 = vunpack.c.h.b16 %v777
        %v1128 = vunpack.c.l.b16 %v778
        %v1129 = vunpack.c.h.b16 %v778
        %v1130 = vunpack.c.l.b16 %v779
        %v1131 = vunpack.c.h.b16 %v779
        %v1132 = vunpack.c.l.b16 %v780
        %v1133 = vunpack.c.h.b16 %v780
        %v1134 = vunpack.c.l.b16 %v781
        %v1135 = vunpack.c.h.b16 %v781
        %v1136 = vunpack.c.l.b16 %v782
        %v1137 = vunpack.c.h.b16 %v782
        %v1138 = vunpack.c.l.b16 %v783
        %v1139 = vunpack.c.h.b16 %v783
        %v1140 = vunpack.c.l.b16 %v784
        %v1141 = vunpack.c.h.b16 %v784
        %v1142 = vunpack.c.l.b16 %v785
        %v1143 = vunpack.c.h.b16 %v785
        %v1144 = vunpack.c.l.b16 %v786
        %v1145 = vunpack.c.h.b16 %v786
        %v1146 = vunpack.c.l.b16 %v787
        %v1147 = vunpack.c.h.b16 %v787
        %v1148 = vunpack.c.l.b16 %v788
        %v1149 = vunpack.c.h.b16 %v788
        %v1150 = vunpack.c.l.b16 %v789
        %v1151 = vunpack.c.h.b16 %v789
        %v1152 = vunpack.c.l.b16 %v790
        %v1153 = vunpack.c.h.b16 %v790
        %v1154 = vunpack.c.l.b16 %v791
        %v1155 = vunpack.c.h.b16 %v791
        %v1156 = vunpack.c.l.b16 %v792
        %v1157 = vunpack.c.h.b16 %v792
        %v1158 = vunpack.c.l.b16 %v793
        %v1159 = vunpack.c.h.b16 %v793
        %v1160 = vunpack.c.l.b16 %v794
        %v1161 = vunpack.c.h.b16 %v794
        %v1162 = vunpack.c.l.b16 %v795
        %v1163 = vunpack.c.h.b16 %v795
        %v1164 = vunpack.c.l.b16 %v796
        %v1165 = vunpack.c.h.b16 %v796
        %v1166 = vunpack.c.l.b16 %v797
        %v1167 = vunpack.c.h.b16 %v797
        %v1168 = vunpack.c.l.b16 %v798
        %v1169 = vunpack.c.h.b16 %v798
        %v1170 = vunpack.c.l.b16 %v799
        %v1171 = vunpack.c.h.b16 %v799
        %v1172 = vunpack.c.l.b16 %v800
        %v1173 = vunpack.c.h.b16 %v800
        %v1174 = vunpack.c.l.b16 %v801
        %v1175 = vunpack.c.h.b16 %v801
        %v1176 = vunpack.c.l.b16 %v802
        %v1177 = vunpack.c.h.b16 %v802
        %v1178 = vunpack.c.l.b16 %v803
        %v1179 = vunpack.c.h.b16 %v803
        %v1180 = vunpack.c.l.b16 %v804
        %v1181 = vunpack.c.h.b16 %v804
        %v1182 = vunpack.c.l.b16 %v805
        %v1183 = vunpack.c.h.b16 %v805
        %v1184 = vunpack.c.l.b16 %v806
        %v1185 = vunpack.c.h.b16 %v806
        %v1186 = vunpack.c.l.b16 %v807
        %v1187 = vunpack.c.h.b16 %v807
        %v1188 = vunpack.c.l.b16 %v808
        %v1189 = vunpack.c.h.b16 %v808
        %v1190 = vunpack.c.l.b16 %v809
        %v1191 = vunpack.c.h.b16 %v809
        %v1192 = vunpack.c.l.b16 %v810
        %v1193 = vunpack.c.h.b16 %v810
        %v1194 = vunpack.c.l.b16 %v811
        %v1195 = vunpack.c.h.b16 %v811
        %v1196 = vpack.c.b16 %v944, %v940
        %v1197 = vpack.c.b16 %v945, %v941
        %v1198 = vpack.c.b16 %v946, %v942
        %v1199 = vpack.c.b16 %v947, %v943
        %v1200 = vpack.c.b16 %v952, %v948
        %v1201 = vpack.c.b16 %v953, %v949
        %v1202 = vpack.c.b16 %v954, %v950
        %v1203 = vpack.c.b16 %v955, %v951
        %v1204 = vpack.c.b16 %v960, %v956
        %v1205 = vpack.c.b16 %v961, %v957
        %v1206 = vpack.c.b16 %v962, %v958
        %v1207 = vpack.c.b16 %v963, %v959
        %v1208 = vpack.c.b16 %v968, %v964
        %v1209 = vpack.c.b16 %v969, %v965
        %v1210 = vpack.c.b16 %v970, %v966
        %v1211 = vpack.c.b16 %v971, %v967
        %v1212 = vpack.c.b16 %v976, %v972
        %v1213 = vpack.c.b16 %v977, %v973
        %v1214 = vpack.c.b16 %v978, %v974
        %v1215 = vpack.c.b16 %v979, %v975
        %v1216 = vpack.c.b16 %v984, %v980
        %v1217 = vpack.c.b16 %v985, %v981
        %v1218 = vpack.c.b16 %v986, %v982
        %v1219 = vpack.c.b16 %v987, %v983
        %v1220 = vpack.c.b16 %v992, %v988
        %v1221 = vpack.c.b16 %v993, %v989
        %v1222 = vpack.c.b16 %v994, %v990
        %v1223 = vpack.c.b16 %v995, %v991
        %v1224 = vpack.c.b16 %v1000, %v996
        %v1225 = vpack.c.b16 %v1001, %v997
        %v1226 = vpack.c.b16 %v1002, %v998
        %v1227 = vpack.c.b16 %v1003, %v999
        %v1228 = vpack.c.b16 %v1008, %v1004
        %v1229 = vpack.c.b16 %v1009, %v1005
        %v1230 = vpack.c.b16 %v1010, %v1006
        %v1231 = vpack.c.b16 %v1011, %v1007
        %v1232 = vpack.c.b16 %v1016, %v1012
        %v1233 = vpack.c.b16 %v1017, %v1013
        %v1234 = vpack.c.b16 %v1018, %v1014
        %v1235 = vpack.c.b16 %v1019, %v1015
        %v1236 = vpack.c.b16 %v1024, %v1020
        %v1237 = vpack.c.b16 %v1025, %v1021
        %v1238 = vpack.c.b16 %v1026, %v1022
        %v1239 = vpack.c.b16 %v1027, %v1023
        %v1240 = vpack.c.b16 %v1032, %v1028
        %v1241 = vpack.c.b16 %v1033, %v1029
        %v1242 = vpack.c.b16 %v1034, %v1030
        %v1243 = vpack.c.b16 %v1035, %v1031
        %v1244 = vpack.c.b16 %v1040, %v1036
        %v1245 = vpack.c.b16 %v1041, %v1037
        %v1246 = vpack.c.b16 %v1042, %v1038
        %v1247 = vpack.c.b16 %v1043, %v1039
        %v1248 = vpack.c.b16 %v1048, %v1044
        %v1249 = vpack.c.b16 %v1049, %v1045
        %v1250 = vpack.c.b16 %v1050, %v1046
        %v1251 = vpack.c.b16 %v1051, %v1047
        %v1252 = vpack.c.b16 %v1056, %v1052
        %v1253 = vpack.c.b16 %v1057, %v1053
        %v1254 = vpack.c.b16 %v1058, %v1054
        %v1255 = vpack.c.b16 %v1059, %v1055
        %v1256 = vpack.c.b16 %v1064, %v1060
        %v1257 = vpack.c.b16 %v1065, %v1061
        %v1258 = vpack.c.b16 %v1066, %v1062
        %v1259 = vpack.c.b16 %v1067, %v1063
        %v1260 = vpack.c.b16 %v1072, %v1068
        %v1261 = vpack.c.b16 %v1073, %v1069
        %v1262 = vpack.c.b16 %v1074, %v1070
        %v1263 = vpack.c.b16 %v1075, %v1071
        %v1264 = vpack.c.b16 %v1080, %v1076
        %v1265 = vpack.c.b16 %v1081, %v1077
        %v1266 = vpack.c.b16 %v1082, %v1078
        %v1267 = vpack.c.b16 %v1083, %v1079
        %v1268 = vpack.c.b16 %v1088, %v1084
        %v1269 = vpack.c.b16 %v1089, %v1085
        %v1270 = vpack.c.b16 %v1090, %v1086
        %v1271 = vpack.c.b16 %v1091, %v1087
        %v1272 = vpack.c.b16 %v1096, %v1092
        %v1273 = vpack.c.b16 %v1097, %v1093
        %v1274 = vpack.c.b16 %v1098, %v1094
        %v1275 = vpack.c.b16 %v1099, %v1095
        %v1276 = vpack.c.b16 %v1104, %v1100
        %v1277 = vpack.c.b16 %v1105, %v1101
        %v1278 = vpack.c.b16 %v1106, %v1102
        %v1279 = vpack.c.b16 %v1107, %v1103
        %v1280 = vpack.c.b16 %v1112, %v1108
        %v1281 = vpack.c.b16 %v1113, %v1109
        %v1282 = vpack.c.b16 %v1114, %v1110
        %v1283 = vpack.c.b16 %v1115, %v1111
        %v1284 = vpack.c.b16 %v1120, %v1116
        %v1285 = vpack.c.b16 %v1121, %v1117
        %v1286 = vpack.c.b16 %v1122, %v1118
        %v1287 = vpack.c.b16 %v1123, %v1119
        %v1288 = vpack.c.b16 %v1128, %v1124
        %v1289 = vpack.c.b16 %v1129, %v1125
        %v1290 = vpack.c.b16 %v1130, %v1126
        %v1291 = vpack.c.b16 %v1131, %v1127
        %v1292 = vpack.c.b16 %v1136, %v1132
        %v1293 = vpack.c.b16 %v1137, %v1133
        %v1294 = vpack.c.b16 %v1138, %v1134
        %v1295 = vpack.c.b16 %v1139, %v1135
        %v1296 = vpack.c.b16 %v1144, %v1140
        %v1297 = vpack.c.b16 %v1145, %v1141
        %v1298 = vpack.c.b16 %v1146, %v1142
        %v1299 = vpack.c.b16 %v1147, %v1143
        %v1300 = vpack.c.b16 %v1152, %v1148
        %v1301 = vpack.c.b16 %v1153, %v1149
        %v1302 = vpack.c.b16 %v1154, %v1150
        %v1303 = vpack.c.b16 %v1155, %v1151
        %v1304 = vpack.c.b16 %v1160, %v1156
        %v1305 = vpack.c.b16 %v1161, %v1157
        %v1306 = vpack.c.b16 %v1162, %v1158
        %v1307 = vpack.c.b16 %v1163, %v1159
        %v1308 = vpack.c.b16 %v1168, %v1164
        %v1309 = vpack.c.b16 %v1169, %v1165
        %v1310 = vpack.c.b16 %v1170, %v1166
        %v1311 = vpack.c.b16 %v1171, %v1167
        %v1312 = vpack.c.b16 %v1176, %v1172
        %v1313 = vpack.c.b16 %v1177, %v1173
        %v1314 = vpack.c.b16 %v1178, %v1174
        %v1315 = vpack.c.b16 %v1179, %v1175
        %v1316 = vpack.c.b16 %v1184, %v1180
        %v1317 = vpack.c.b16 %v1185, %v1181
        %v1318 = vpack.c.b16 %v1186, %v1182
        %v1319 = vpack.c.b16 %v1187, %v1183
        %v1320 = vpack.c.b16 %v1192, %v1188
        %v1321 = vpack.c.b16 %v1193, %v1189
        %v1322 = vpack.c.b16 %v1194, %v1190
        %v1323 = vpack.c.b16 %v1195, %v1191
        %1452 = vmatpush.bf16.msra.mxu0 %v1224
        %1453 = vmatpush.bf16.msra.mxu0 %v1220
        %1454 = vmatpush.bf16.msra.mxu0 %v1216
        %1455 = vmatpush.bf16.msra.mxu0 %v1212
        %1456 = vmatpush.bf16.msra.mxu0 %v1208
        %1457 = vmatpush.bf16.msra.mxu0 %v1204
        %1458 = vmatpush.bf16.msra.mxu0 %v1200
        %1459 = vmatpush.bf16.msra.mxu0 %v1196
        %1460 = vmatmul.bf16.gmra.mxu0 %v680
        %v1461 = vpop.f32.mrf.mxu0
        %v1462 = vadd.f32 0.0, %v1461
        %v1463 = vpop.f32.mrf.mxu0
        %1464 = vdwg.mxu0
        %1465 = vmatpush.bf16.msra.mxu0 %v1256
        %1466 = vmatpush.bf16.msra.mxu0 %v1252
        %1467 = vmatpush.bf16.msra.mxu0 %v1248
        %1468 = vmatpush.bf16.msra.mxu0 %v1244
        %1469 = vmatpush.bf16.msra.mxu0 %v1240
        %1470 = vmatpush.bf16.msra.mxu0 %v1236
        %1471 = vmatpush.bf16.msra.mxu0 %v1232
        %1472 = vmatpush.bf16.msra.mxu0 %v1228
        %1473 = vmatmul.bf16.gmra.mxu0 %v681
        %v1474 = vpop.f32.mrf.mxu0
        %v1475 = vadd.f32 %v1462, %v1474
        %v1476 = vpop.f32.mrf.mxu0
        %1477 = vdwg.mxu0
        %1478 = vmatpush.bf16.msra.mxu0 %v1288
        %1479 = vmatpush.bf16.msra.mxu0 %v1284
        %1480 = vmatpush.bf16.msra.mxu0 %v1280
        %1481 = vmatpush.bf16.msra.mxu0 %v1276
        %1482 = vmatpush.bf16.msra.mxu0 %v1272
        %1483 = vmatpush.bf16.msra.mxu0 %v1268
        %1484 = vmatpush.bf16.msra.mxu0 %v1264
        %1485 = vmatpush.bf16.msra.mxu0 %v1260
        %1486 = vmatmul.bf16.gmra.mxu0 %v682
        %v1487 = vpop.f32.mrf.mxu0
        %v1488 = vadd.f32 %v1475, %v1487
        %v1489 = vpop.f32.mrf.mxu0
        %1490 = vdwg.mxu0
        %1491 = vmatpush.bf16.msra.mxu0 %v1320
        %1492 = vmatpush.bf16.msra.mxu0 %v1316
        %1493 = vmatpush.bf16.msra.mxu0 %v1312
        %1494 = vmatpush.bf16.msra.mxu0 %v1308
        %1495 = vmatpush.bf16.msra.mxu0 %v1304
        %1496 = vmatpush.bf16.msra.mxu0 %v1300
        %1497 = vmatpush.bf16.msra.mxu0 %v1296
        %1498 = vmatpush.bf16.msra.mxu0 %v1292
        %1499 = vmatmul.bf16.gmra.mxu0 %v683
        %v1500 = vpop.f32.mrf.mxu0
        %v1501 = vadd.f32 %v1488, %v1500
        %v1502 = vpop.f32.mrf.mxu0
        %1503 = vdwg.mxu0
        %1504 = vmatpush.bf16.msra.mxu0 %v1225
        %1505 = vmatpush.bf16.msra.mxu0 %v1221
        %1506 = vmatpush.bf16.msra.mxu0 %v1217
        %1507 = vmatpush.bf16.msra.mxu0 %v1213
        %1508 = vmatpush.bf16.msra.mxu0 %v1209
        %1509 = vmatpush.bf16.msra.mxu0 %v1205
        %1510 = vmatpush.bf16.msra.mxu0 %v1201
        %1511 = vmatpush.bf16.msra.mxu0 %v1197
        %1512 = vmatmul.bf16.gmra.mxu0 %v680
        %v1513 = vpop.f32.mrf.mxu0
        %v1514 = vadd.f32 0.0, %v1513
        %v1515 = vpop.f32.mrf.mxu0
        %1516 = vdwg.mxu0
        %1517 = vmatpush.bf16.msra.mxu0 %v1257
        %1518 = vmatpush.bf16.msra.mxu0 %v1253
        %1519 = vmatpush.bf16.msra.mxu0 %v1249
        %1520 = vmatpush.bf16.msra.mxu0 %v1245
        %1521 = vmatpush.bf16.msra.mxu0 %v1241
        %1522 = vmatpush.bf16.msra.mxu0 %v1237
        %1523 = vmatpush.bf16.msra.mxu0 %v1233
        %1524 = vmatpush.bf16.msra.mxu0 %v1229
        %1525 = vmatmul.bf16.gmra.mxu0 %v681
        %v1526 = vpop.f32.mrf.mxu0
        %v1527 = vadd.f32 %v1514, %v1526
        %v1528 = vpop.f32.mrf.mxu0
        %1529 = vdwg.mxu0
        %1530 = vmatpush.bf16.msra.mxu0 %v1289
        %1531 = vmatpush.bf16.msra.mxu0 %v1285
        %1532 = vmatpush.bf16.msra.mxu0 %v1281
        %1533 = vmatpush.bf16.msra.mxu0 %v1277
        %1534 = vmatpush.bf16.msra.mxu0 %v1273
        %1535 = vmatpush.bf16.msra.mxu0 %v1269
        %1536 = vmatpush.bf16.msra.mxu0 %v1265
        %1537 = vmatpush.bf16.msra.mxu0 %v1261
        %1538 = vmatmul.bf16.gmra.mxu0 %v682
        %v1539 = vpop.f32.mrf.mxu0
        %v1540 = vadd.f32 %v1527, %v1539
        %v1541 = vpop.f32.mrf.mxu0
        %1542 = vdwg.mxu0
        %1543 = vmatpush.bf16.msra.mxu0 %v1321
        %1544 = vmatpush.bf16.msra.mxu0 %v1317
        %1545 = vmatpush.bf16.msra.mxu0 %v1313
        %1546 = vmatpush.bf16.msra.mxu0 %v1309
        %1547 = vmatpush.bf16.msra.mxu0 %v1305
        %1548 = vmatpush.bf16.msra.mxu0 %v1301
        %1549 = vmatpush.bf16.msra.mxu0 %v1297
        %1550 = vmatpush.bf16.msra.mxu0 %v1293
        %1551 = vmatmul.bf16.gmra.mxu0 %v683
        %v1552 = vpop.f32.mrf.mxu0
        %v1553 = vadd.f32 %v1540, %v1552
        %v1554 = vpop.f32.mrf.mxu0
        %1555 = vdwg.mxu0
        %1556 = vmatpush.bf16.msra.mxu0 %v1226
        %1557 = vmatpush.bf16.msra.mxu0 %v1222
        %1558 = vmatpush.bf16.msra.mxu0 %v1218
        %1559 = vmatpush.bf16.msra.mxu0 %v1214
        %1560 = vmatpush.bf16.msra.mxu0 %v1210
        %1561 = vmatpush.bf16.msra.mxu0 %v1206
        %1562 = vmatpush.bf16.msra.mxu0 %v1202
        %1563 = vmatpush.bf16.msra.mxu0 %v1198
        %1564 = vmatmul.bf16.gmra.mxu0 %v680
        %v1565 = vpop.f32.mrf.mxu0
        %v1566 = vadd.f32 0.0, %v1565
        %v1567 = vpop.f32.mrf.mxu0
        %1568 = vdwg.mxu0
        %1569 = vmatpush.bf16.msra.mxu0 %v1258
        %1570 = vmatpush.bf16.msra.mxu0 %v1254
        %1571 = vmatpush.bf16.msra.mxu0 %v1250
        %1572 = vmatpush.bf16.msra.mxu0 %v1246
        %1573 = vmatpush.bf16.msra.mxu0 %v1242
        %1574 = vmatpush.bf16.msra.mxu0 %v1238
        %1575 = vmatpush.bf16.msra.mxu0 %v1234
        %1576 = vmatpush.bf16.msra.mxu0 %v1230
        %1577 = vmatmul.bf16.gmra.mxu0 %v681
        %v1578 = vpop.f32.mrf.mxu0
        %v1579 = vadd.f32 %v1566, %v1578
        %v1580 = vpop.f32.mrf.mxu0
        %1581 = vdwg.mxu0
        %1582 = vmatpush.bf16.msra.mxu0 %v1290
        %1583 = vmatpush.bf16.msra.mxu0 %v1286
        %1584 = vmatpush.bf16.msra.mxu0 %v1282
        %1585 = vmatpush.bf16.msra.mxu0 %v1278
        %1586 = vmatpush.bf16.msra.mxu0 %v1274
        %1587 = vmatpush.bf16.msra.mxu0 %v1270
        %1588 = vmatpush.bf16.msra.mxu0 %v1266
        %1589 = vmatpush.bf16.msra.mxu0 %v1262
        %1590 = vmatmul.bf16.gmra.mxu0 %v682
        %v1591 = vpop.f32.mrf.mxu0
        %v1592 = vadd.f32 %v1579, %v1591
        %v1593 = vpop.f32.mrf.mxu0
        %1594 = vdwg.mxu0
        %1595 = vmatpush.bf16.msra.mxu0 %v1322
        %1596 = vmatpush.bf16.msra.mxu0 %v1318
        %1597 = vmatpush.bf16.msra.mxu0 %v1314
        %1598 = vmatpush.bf16.msra.mxu0 %v1310
        %1599 = vmatpush.bf16.msra.mxu0 %v1306
        %1600 = vmatpush.bf16.msra.mxu0 %v1302
        %1601 = vmatpush.bf16.msra.mxu0 %v1298
        %1602 = vmatpush.bf16.msra.mxu0 %v1294
        %1603 = vmatmul.bf16.gmra.mxu0 %v683
        %v1604 = vpop.f32.mrf.mxu0
        %v1605 = vadd.f32 %v1592, %v1604
        %v1606 = vpop.f32.mrf.mxu0
        %1607 = vdwg.mxu0
        %1608 = vmatpush.bf16.msra.mxu0 %v1227
        %1609 = vmatpush.bf16.msra.mxu0 %v1223
        %1610 = vmatpush.bf16.msra.mxu0 %v1219
        %1611 = vmatpush.bf16.msra.mxu0 %v1215
        %1612 = vmatpush.bf16.msra.mxu0 %v1211
        %1613 = vmatpush.bf16.msra.mxu0 %v1207
        %1614 = vmatpush.bf16.msra.mxu0 %v1203
        %1615 = vmatpush.bf16.msra.mxu0 %v1199
        %1616 = vmatmul.bf16.gmra.mxu0 %v680
        %v1617 = vpop.f32.mrf.mxu0
        %v1618 = vadd.f32 0.0, %v1617
        %v1619 = vpop.f32.mrf.mxu0
        %1620 = vdwg.mxu0
        %1621 = vmatpush.bf16.msra.mxu0 %v1259
        %1622 = vmatpush.bf16.msra.mxu0 %v1255
        %1623 = vmatpush.bf16.msra.mxu0 %v1251
        %1624 = vmatpush.bf16.msra.mxu0 %v1247
        %1625 = vmatpush.bf16.msra.mxu0 %v1243
        %1626 = vmatpush.bf16.msra.mxu0 %v1239
        %1627 = vmatpush.bf16.msra.mxu0 %v1235
        %1628 = vmatpush.bf16.msra.mxu0 %v1231
        %1629 = vmatmul.bf16.gmra.mxu0 %v681
        %v1630 = vpop.f32.mrf.mxu0
        %v1631 = vadd.f32 %v1618, %v1630
        %v1632 = vpop.f32.mrf.mxu0
        %1633 = vdwg.mxu0
        %1634 = vmatpush.bf16.msra.mxu0 %v1291
        %1635 = vmatpush.bf16.msra.mxu0 %v1287
        %1636 = vmatpush.bf16.msra.mxu0 %v1283
        %1637 = vmatpush.bf16.msra.mxu0 %v1279
        %1638 = vmatpush.bf16.msra.mxu0 %v1275
        %1639 = vmatpush.bf16.msra.mxu0 %v1271
        %1640 = vmatpush.bf16.msra.mxu0 %v1267
        %1641 = vmatpush.bf16.msra.mxu0 %v1263
        %1642 = vmatmul.bf16.gmra.mxu0 %v682
        %v1643 = vpop.f32.mrf.mxu0
        %v1644 = vadd.f32 %v1631, %v1643
        %v1645 = vpop.f32.mrf.mxu0
        %1646 = vdwg.mxu0
        %1647 = vmatpush.bf16.msra.mxu0 %v1323
        %1648 = vmatpush.bf16.msra.mxu0 %v1319
        %1649 = vmatpush.bf16.msra.mxu0 %v1315
        %1650 = vmatpush.bf16.msra.mxu0 %v1311
        %1651 = vmatpush.bf16.msra.mxu0 %v1307
        %1652 = vmatpush.bf16.msra.mxu0 %v1303
        %1653 = vmatpush.bf16.msra.mxu0 %v1299
        %1654 = vmatpush.bf16.msra.mxu0 %v1295
        %1655 = vmatmul.bf16.gmra.mxu0 %v683
        %v1656 = vpop.f32.mrf.mxu0
        %v1657 = vadd.f32 %v1644, %v1656
        %v1658 = vpop.f32.mrf.mxu0
        %1659 = vdwg.mxu0
        %v1660 = vrot.slane %v1501, 4
        %v1661 = vadd.f32 %v1501, %v1660
        %v1662 = vrot.slane %v1661, 2
        %v1663 = vadd.f32 %v1661, %v1662
        %v1664 = vrot.slane %v1663, 1
        %v1665 = vadd.f32 %v1663, %v1664
        %v1666 = vrot.slane %v1553, 4
        %v1667 = vadd.f32 %v1553, %v1666
        %v1668 = vrot.slane %v1667, 2
        %v1669 = vadd.f32 %v1667, %v1668
        %v1670 = vrot.slane %v1669, 1
        %v1671 = vadd.f32 %v1669, %v1670
        %v1672 = vrot.slane %v1605, 4
        %v1673 = vadd.f32 %v1605, %v1672
        %v1674 = vrot.slane %v1673, 2
        %v1675 = vadd.f32 %v1673, %v1674
        %v1676 = vrot.slane %v1675, 1
        %v1677 = vadd.f32 %v1675, %v1676
        %v1678 = vrot.slane %v1657, 4
        %v1679 = vadd.f32 %v1657, %v1678
        %v1680 = vrot.slane %v1679, 2
        %v1681 = vadd.f32 %v1679, %v1680
        %v1682 = vrot.slane %v1681, 1
        %v1683 = vadd.f32 %v1681, %v1682
        %v1684 = vmul.f32 %v1665, %v539
        %v1685 = vmul.f32 %v1671, %v539
        %v1686 = vmul.f32 %v1677, %v539
        %v1687 = vmul.f32 %v1683, %v539
        %v1688 = vmul.f32 %v1501, %v1501
        %v1689 = vmul.f32 %v1553, %v1553
        %v1690 = vmul.f32 %v1605, %v1605
        %v1691 = vmul.f32 %v1657, %v1657
        %v1692 = vrot.slane %v1688, 4
        %v1693 = vadd.f32 %v1688, %v1692
        %v1694 = vrot.slane %v1693, 2
        %v1695 = vadd.f32 %v1693, %v1694
        %v1696 = vrot.slane %v1695, 1
        %v1697 = vadd.f32 %v1695, %v1696
        %v1698 = vrot.slane %v1689, 4
        %v1699 = vadd.f32 %v1689, %v1698
        %v1700 = vrot.slane %v1699, 2
        %v1701 = vadd.f32 %v1699, %v1700
        %v1702 = vrot.slane %v1701, 1
        %v1703 = vadd.f32 %v1701, %v1702
        %v1704 = vrot.slane %v1690, 4
        %v1705 = vadd.f32 %v1690, %v1704
        %v1706 = vrot.slane %v1705, 2
        %v1707 = vadd.f32 %v1705, %v1706
        %v1708 = vrot.slane %v1707, 1
        %v1709 = vadd.f32 %v1707, %v1708
        %v1710 = vrot.slane %v1691, 4
        %v1711 = vadd.f32 %v1691, %v1710
        %v1712 = vrot.slane %v1711, 2
        %v1713 = vadd.f32 %v1711, %v1712
        %v1714 = vrot.slane %v1713, 1
        %v1715 = vadd.f32 %v1713, %v1714
        %v1716 = vmul.f32 %v1697, %v539
        %v1717 = vmul.f32 %v1703, %v539
        %v1718 = vmul.f32 %v1709, %v539
        %v1719 = vmul.f32 %v1715, %v539
        %v1720 = vmul.f32 %v1684, %v1684
        %v1721 = vmul.f32 %v1685, %v1685
        %v1722 = vmul.f32 %v1686, %v1686
        %v1723 = vmul.f32 %v1687, %v1687
        %v1724 = vsub.f32 %v1716, %v1720
        %v1725 = vsub.f32 %v1717, %v1721
        %v1726 = vsub.f32 %v1718, %v1722
        %v1727 = vsub.f32 %v1719, %v1723
        %v1728 = vmax.f32 %v1724, 0.0
        %v1729 = vmax.f32 %v1725, 0.0
        %v1730 = vmax.f32 %v1726, 0.0
        %v1731 = vmax.f32 %v1727, 0.0
        %v1732 = vadd.f32 %v1728, 1e-05
        %v1733 = vadd.f32 %v1729, 1e-05
        %v1734 = vadd.f32 %v1730, 1e-05
        %v1735 = vadd.f32 %v1731, 1e-05
        %v1736 = vrsqrt.pop %v1732
        %v1737 = vmul.f32 %v1736, %v1732
        %v1738 = vmul.f32 %v1737, %v1736
        %v1739 = vmul.f32 0.5, %v1738
        %v1740 = vsub.f32 1.5, %v1739
        %v1741 = vmul.f32 %v1736, %v1740
        %vm1742 = vweird.f32 %v1732
        %vm1743 = vweird.f32 %v1736
        %vm1744 = vmor %vm1742, %vm1743
        %v1745 = vsel %vm1744, %v1736, %v1741
        %v1746 = vrsqrt.pop %v1733
        %v1747 = vmul.f32 %v1746, %v1733
        %v1748 = vmul.f32 %v1747, %v1746
        %v1749 = vmul.f32 0.5, %v1748
        %v1750 = vsub.f32 1.5, %v1749
        %v1751 = vmul.f32 %v1746, %v1750
        %vm1752 = vweird.f32 %v1733
        %vm1753 = vweird.f32 %v1746
        %vm1754 = vmor %vm1752, %vm1753
        %v1755 = vsel %vm1754, %v1746, %v1751
        %v1756 = vrsqrt.pop %v1734
        %v1757 = vmul.f32 %v1756, %v1734
        %v1758 = vmul.f32 %v1757, %v1756
        %v1759 = vmul.f32 0.5, %v1758
        %v1760 = vsub.f32 1.5, %v1759
        %v1761 = vmul.f32 %v1756, %v1760
        %vm1762 = vweird.f32 %v1734
        %vm1763 = vweird.f32 %v1756
        %vm1764 = vmor %vm1762, %vm1763
        %v1765 = vsel %vm1764, %v1756, %v1761
        %v1766 = vrsqrt.pop %v1735
        %v1767 = vmul.f32 %v1766, %v1735
        %v1768 = vmul.f32 %v1767, %v1766
        %v1769 = vmul.f32 0.5, %v1768
        %v1770 = vsub.f32 1.5, %v1769
        %v1771 = vmul.f32 %v1766, %v1770
        %vm1772 = vweird.f32 %v1735
        %vm1773 = vweird.f32 %v1766
        %vm1774 = vmor %vm1772, %vm1773
        %v1775 = vsel %vm1774, %v1766, %v1771
        %v1776 = vmul.f32 %v351, %v1745
        %v1777 = vmul.f32 %v352, %v1755
        %v1778 = vmul.f32 %v353, %v1765
        %v1779 = vmul.f32 %v354, %v1775
        %v1780 = vmul.f32 %v1684, %v1776
        %v1781 = vmul.f32 %v1685, %v1777
        %v1782 = vmul.f32 %v1686, %v1778
        %v1783 = vmul.f32 %v1687, %v1779
        %v1788 = vrot.slane %v1780, 7
        %v1789 = vrot.slane %v1781, 7
        %v1790 = vrot.slane %v1782, 7
        %v1791 = vrot.slane %v1783, 7
        %v1796 = vsub.f32 %v351, %v1788
        %v1797 = vsub.f32 %v352, %v1789
        %v1798 = vsub.f32 %v353, %v1790
        %v1799 = vsub.f32 %v354, %v1791
        %v1800 = vperm.slane %v1776, 2
        %v1801 = vperm.slane %v1777, 2
        %v1802 = vperm.slane %v1778, 2
        %v1803 = vperm.slane %v1779, 2
        %v1804 = vmul.f32 %v1501, %v1800
        %v1805 = vmul.f32 %v1553, %v1801
        %v1806 = vmul.f32 %v1605, %v1802
        %v1807 = vmul.f32 %v1657, %v1803
        %v1808 = vperm.slane %v1796, 3
        %v1809 = vperm.slane %v1797, 3
        %v1810 = vperm.slane %v1798, 3
        %v1811 = vperm.slane %v1799, 3
        %v1812 = vadd.f32 %v1804, %v1808
        %v1813 = vadd.f32 %v1805, %v1809
        %v1814 = vadd.f32 %v1806, %v1810
        %v1815 = vadd.f32 %v1807, %v1811
        %v1816 = vmul.f32 %v1812, 0.01
        %v1817 = vmul.f32 %v1813, 0.01
        %v1818 = vmul.f32 %v1814, 0.01
        %v1819 = vmul.f32 %v1815, 0.01
        %v1820 = vmax.f32 %v1812, %v1816
        %v1821 = vmax.f32 %v1813, %v1817
        %v1822 = vmax.f32 %v1814, %v1818
        %v1823 = vmax.f32 %v1815, %v1819
        %v1824 = vpack.c.bf16 %v1820, %v1820
        %v1825 = vpack.c.bf16 %v1821, %v1821
        %v1826 = vpack.c.bf16 %v1822, %v1822
        %v1827 = vpack.c.bf16 %v1823, %v1823
        %v1828 = vld [vmem:[#allocation8] sm:$0xff]
        %v1829 = vld [vmem:[#allocation8 + $0x8] sm:$0xff]
        %v1830 = vld [vmem:[#allocation8 + $0x10] sm:$0xff]
        %v1831 = vld [vmem:[#allocation8 + $0x18] sm:$0xff]
        %v1832 = vld [vmem:[#allocation8 + $0x20] sm:$0xff]
        %v1833 = vld [vmem:[#allocation8 + $0x28] sm:$0xff]
        %v1834 = vld [vmem:[#allocation8 + $0x30] sm:$0xff]
        %v1835 = vld [vmem:[#allocation8 + $0x38] sm:$0xff]
        %v1836 = vld [vmem:[#allocation8 + $0x40] sm:$0xff]
        %v1837 = vld [vmem:[#allocation8 + $0x48] sm:$0xff]
        %v1838 = vld [vmem:[#allocation8 + $0x50] sm:$0xff]
        %v1839 = vld [vmem:[#allocation8 + $0x58] sm:$0xff]
        %v1840 = vld [vmem:[#allocation8 + $0x60] sm:$0xff]
        %v1841 = vld [vmem:[#allocation8 + $0x68] sm:$0xff]
        %v1842 = vld [vmem:[#allocation8 + $0x70] sm:$0xff]
        %v1843 = vld [vmem:[#allocation8 + $0x78] sm:$0xff]
        %v1844 = vld [vmem:[#allocation8 + $0x80] sm:$0xff]
        %v1845 = vld [vmem:[#allocation8 + $0x88] sm:$0xff]
        %v1846 = vld [vmem:[#allocation8 + $0x90] sm:$0xff]
        %v1847 = vld [vmem:[#allocation8 + $0x98] sm:$0xff]
        %v1848 = vld [vmem:[#allocation8 + $0xa0] sm:$0xff]
        %v1849 = vld [vmem:[#allocation8 + $0xa8] sm:$0xff]
        %v1850 = vld [vmem:[#allocation8 + $0xb0] sm:$0xff]
        %v1851 = vld [vmem:[#allocation8 + $0xb8] sm:$0xff]
        %v1852 = vld [vmem:[#allocation8 + $0xc0] sm:$0xff]
        %v1853 = vld [vmem:[#allocation8 + $0xc8] sm:$0xff]
        %v1854 = vld [vmem:[#allocation8 + $0xd0] sm:$0xff]
        %v1855 = vld [vmem:[#allocation8 + $0xd8] sm:$0xff]
        %v1856 = vld [vmem:[#allocation8 + $0xe0] sm:$0xff]
        %v1857 = vld [vmem:[#allocation8 + $0xe8] sm:$0xff]
        %v1858 = vld [vmem:[#allocation8 + $0xf0] sm:$0xff]
        %v1859 = vld [vmem:[#allocation8 + $0xf8] sm:$0xff]
        %v1860 = vld [vmem:[#allocation8 + $0x100] sm:$0xff]
        %v1861 = vld [vmem:[#allocation8 + $0x108] sm:$0xff]
        %v1862 = vld [vmem:[#allocation8 + $0x110] sm:$0xff]
        %v1863 = vld [vmem:[#allocation8 + $0x118] sm:$0xff]
        %v1864 = vld [vmem:[#allocation8 + $0x120] sm:$0xff]
        %v1865 = vld [vmem:[#allocation8 + $0x128] sm:$0xff]
        %v1866 = vld [vmem:[#allocation8 + $0x130] sm:$0xff]
        %v1867 = vld [vmem:[#allocation8 + $0x138] sm:$0xff]
        %v1868 = vld [vmem:[#allocation8 + $0x140] sm:$0xff]
        %v1869 = vld [vmem:[#allocation8 + $0x148] sm:$0xff]
        %v1870 = vld [vmem:[#allocation8 + $0x150] sm:$0xff]
        %v1871 = vld [vmem:[#allocation8 + $0x158] sm:$0xff]
        %v1872 = vld [vmem:[#allocation8 + $0x160] sm:$0xff]
        %v1873 = vld [vmem:[#allocation8 + $0x168] sm:$0xff]
        %v1874 = vld [vmem:[#allocation8 + $0x170] sm:$0xff]
        %v1875 = vld [vmem:[#allocation8 + $0x178] sm:$0xff]
        %v1876 = vld [vmem:[#allocation8 + $0x180] sm:$0xff]
        %v1877 = vld [vmem:[#allocation8 + $0x188] sm:$0xff]
        %v1878 = vld [vmem:[#allocation8 + $0x190] sm:$0xff]
        %v1879 = vld [vmem:[#allocation8 + $0x198] sm:$0xff]
        %v1880 = vld [vmem:[#allocation8 + $0x1a0] sm:$0xff]
        %v1881 = vld [vmem:[#allocation8 + $0x1a8] sm:$0xff]
        %v1882 = vld [vmem:[#allocation8 + $0x1b0] sm:$0xff]
        %v1883 = vld [vmem:[#allocation8 + $0x1b8] sm:$0xff]
        %v1884 = vld [vmem:[#allocation8 + $0x1c0] sm:$0xff]
        %v1885 = vld [vmem:[#allocation8 + $0x1c8] sm:$0xff]
        %v1886 = vld [vmem:[#allocation8 + $0x1d0] sm:$0xff]
        %v1887 = vld [vmem:[#allocation8 + $0x1d8] sm:$0xff]
        %v1888 = vld [vmem:[#allocation8 + $0x1e0] sm:$0xff]
        %v1889 = vld [vmem:[#allocation8 + $0x1e8] sm:$0xff]
        %v1890 = vld [vmem:[#allocation8 + $0x1f0] sm:$0xff]
        %v1891 = vld [vmem:[#allocation8 + $0x1f8] sm:$0xff]
        %v1892 = vld [vmem:[#allocation8 + $0x200] sm:$0xff]
        %v1893 = vld [vmem:[#allocation8 + $0x208] sm:$0xff]
        %v1894 = vld [vmem:[#allocation8 + $0x210] sm:$0xff]
        %v1895 = vld [vmem:[#allocation8 + $0x218] sm:$0xff]
        %v1896 = vld [vmem:[#allocation8 + $0x220] sm:$0xff]
        %v1897 = vld [vmem:[#allocation8 + $0x228] sm:$0xff]
        %v1898 = vld [vmem:[#allocation8 + $0x230] sm:$0xff]
        %v1899 = vld [vmem:[#allocation8 + $0x238] sm:$0xff]
        %v1900 = vld [vmem:[#allocation8 + $0x240] sm:$0xff]
        %v1901 = vld [vmem:[#allocation8 + $0x248] sm:$0xff]
        %v1902 = vld [vmem:[#allocation8 + $0x250] sm:$0xff]
        %v1903 = vld [vmem:[#allocation8 + $0x258] sm:$0xff]
        %v1904 = vld [vmem:[#allocation8 + $0x260] sm:$0xff]
        %v1905 = vld [vmem:[#allocation8 + $0x268] sm:$0xff]
        %v1906 = vld [vmem:[#allocation8 + $0x270] sm:$0xff]
        %v1907 = vld [vmem:[#allocation8 + $0x278] sm:$0xff]
        %v1908 = vld [vmem:[#allocation8 + $0x280] sm:$0xff]
        %v1909 = vld [vmem:[#allocation8 + $0x288] sm:$0xff]
        %v1910 = vld [vmem:[#allocation8 + $0x290] sm:$0xff]
        %v1911 = vld [vmem:[#allocation8 + $0x298] sm:$0xff]
        %v1912 = vld [vmem:[#allocation8 + $0x2a0] sm:$0xff]
        %v1913 = vld [vmem:[#allocation8 + $0x2a8] sm:$0xff]
        %v1914 = vld [vmem:[#allocation8 + $0x2b0] sm:$0xff]
        %v1915 = vld [vmem:[#allocation8 + $0x2b8] sm:$0xff]
        %v1916 = vld [vmem:[#allocation8 + $0x2c0] sm:$0xff]
        %v1917 = vld [vmem:[#allocation8 + $0x2c8] sm:$0xff]
        %v1918 = vld [vmem:[#allocation8 + $0x2d0] sm:$0xff]
        %v1919 = vld [vmem:[#allocation8 + $0x2d8] sm:$0xff]
        %v1920 = vld [vmem:[#allocation8 + $0x2e0] sm:$0xff]
        %v1921 = vld [vmem:[#allocation8 + $0x2e8] sm:$0xff]
        %v1922 = vld [vmem:[#allocation8 + $0x2f0] sm:$0xff]
        %v1923 = vld [vmem:[#allocation8 + $0x2f8] sm:$0xff]
        %v1924 = vld [vmem:[#allocation8 + $0x300] sm:$0xff]
        %v1925 = vld [vmem:[#allocation8 + $0x308] sm:$0xff]
        %v1926 = vld [vmem:[#allocation8 + $0x310] sm:$0xff]
        %v1927 = vld [vmem:[#allocation8 + $0x318] sm:$0xff]
        %v1928 = vld [vmem:[#allocation8 + $0x320] sm:$0xff]
        %v1929 = vld [vmem:[#allocation8 + $0x328] sm:$0xff]
        %v1930 = vld [vmem:[#allocation8 + $0x330] sm:$0xff]
        %v1931 = vld [vmem:[#allocation8 + $0x338] sm:$0xff]
        %v1932 = vld [vmem:[#allocation8 + $0x340] sm:$0xff]
        %v1933 = vld [vmem:[#allocation8 + $0x348] sm:$0xff]
        %v1934 = vld [vmem:[#allocation8 + $0x350] sm:$0xff]
        %v1935 = vld [vmem:[#allocation8 + $0x358] sm:$0xff]
        %v1936 = vld [vmem:[#allocation8 + $0x360] sm:$0xff]
        %v1937 = vld [vmem:[#allocation8 + $0x368] sm:$0xff]
        %v1938 = vld [vmem:[#allocation8 + $0x370] sm:$0xff]
        %v1939 = vld [vmem:[#allocation8 + $0x378] sm:$0xff]
        %v1940 = vld [vmem:[#allocation8 + $0x380] sm:$0xff]
        %v1941 = vld [vmem:[#allocation8 + $0x388] sm:$0xff]
        %v1942 = vld [vmem:[#allocation8 + $0x390] sm:$0xff]
        %v1943 = vld [vmem:[#allocation8 + $0x398] sm:$0xff]
        %v1944 = vld [vmem:[#allocation8 + $0x3a0] sm:$0xff]
        %v1945 = vld [vmem:[#allocation8 + $0x3a8] sm:$0xff]
        %v1946 = vld [vmem:[#allocation8 + $0x3b0] sm:$0xff]
        %v1947 = vld [vmem:[#allocation8 + $0x3b8] sm:$0xff]
        %v1948 = vld [vmem:[#allocation8 + $0x3c0] sm:$0xff]
        %v1949 = vld [vmem:[#allocation8 + $0x3c8] sm:$0xff]
        %v1950 = vld [vmem:[#allocation8 + $0x3d0] sm:$0xff]
        %v1951 = vld [vmem:[#allocation8 + $0x3d8] sm:$0xff]
        %v1952 = vld [vmem:[#allocation8 + $0x3e0] sm:$0xff]
        %v1953 = vld [vmem:[#allocation8 + $0x3e8] sm:$0xff]
        %v1954 = vld [vmem:[#allocation8 + $0x3f0] sm:$0xff]
        %v1955 = vld [vmem:[#allocation8 + $0x3f8] sm:$0xff]
        %v2084 = vunpack.c.l.b16 %v1828
        %v2085 = vunpack.c.h.b16 %v1828
        %v2086 = vunpack.c.l.b16 %v1829
        %v2087 = vunpack.c.h.b16 %v1829
        %v2088 = vunpack.c.l.b16 %v1830
        %v2089 = vunpack.c.h.b16 %v1830
        %v2090 = vunpack.c.l.b16 %v1831
        %v2091 = vunpack.c.h.b16 %v1831
        %v2092 = vunpack.c.l.b16 %v1832
        %v2093 = vunpack.c.h.b16 %v1832
        %v2094 = vunpack.c.l.b16 %v1833
        %v2095 = vunpack.c.h.b16 %v1833
        %v2096 = vunpack.c.l.b16 %v1834
        %v2097 = vunpack.c.h.b16 %v1834
        %v2098 = vunpack.c.l.b16 %v1835
        %v2099 = vunpack.c.h.b16 %v1835
        %v2100 = vunpack.c.l.b16 %v1836
        %v2101 = vunpack.c.h.b16 %v1836
        %v2102 = vunpack.c.l.b16 %v1837
        %v2103 = vunpack.c.h.b16 %v1837
        %v2104 = vunpack.c.l.b16 %v1838
        %v2105 = vunpack.c.h.b16 %v1838
        %v2106 = vunpack.c.l.b16 %v1839
        %v2107 = vunpack.c.h.b16 %v1839
        %v2108 = vunpack.c.l.b16 %v1840
        %v2109 = vunpack.c.h.b16 %v1840
        %v2110 = vunpack.c.l.b16 %v1841
        %v2111 = vunpack.c.h.b16 %v1841
        %v2112 = vunpack.c.l.b16 %v1842
        %v2113 = vunpack.c.h.b16 %v1842
        %v2114 = vunpack.c.l.b16 %v1843
        %v2115 = vunpack.c.h.b16 %v1843
        %v2116 = vunpack.c.l.b16 %v1844
        %v2117 = vunpack.c.h.b16 %v1844
        %v2118 = vunpack.c.l.b16 %v1845
        %v2119 = vunpack.c.h.b16 %v1845
        %v2120 = vunpack.c.l.b16 %v1846
        %v2121 = vunpack.c.h.b16 %v1846
        %v2122 = vunpack.c.l.b16 %v1847
        %v2123 = vunpack.c.h.b16 %v1847
        %v2124 = vunpack.c.l.b16 %v1848
        %v2125 = vunpack.c.h.b16 %v1848
        %v2126 = vunpack.c.l.b16 %v1849
        %v2127 = vunpack.c.h.b16 %v1849
        %v2128 = vunpack.c.l.b16 %v1850
        %v2129 = vunpack.c.h.b16 %v1850
        %v2130 = vunpack.c.l.b16 %v1851
        %v2131 = vunpack.c.h.b16 %v1851
        %v2132 = vunpack.c.l.b16 %v1852
        %v2133 = vunpack.c.h.b16 %v1852
        %v2134 = vunpack.c.l.b16 %v1853
        %v2135 = vunpack.c.h.b16 %v1853
        %v2136 = vunpack.c.l.b16 %v1854
        %v2137 = vunpack.c.h.b16 %v1854
        %v2138 = vunpack.c.l.b16 %v1855
        %v2139 = vunpack.c.h.b16 %v1855
        %v2140 = vunpack.c.l.b16 %v1856
        %v2141 = vunpack.c.h.b16 %v1856
        %v2142 = vunpack.c.l.b16 %v1857
        %v2143 = vunpack.c.h.b16 %v1857
        %v2144 = vunpack.c.l.b16 %v1858
        %v2145 = vunpack.c.h.b16 %v1858
        %v2146 = vunpack.c.l.b16 %v1859
        %v2147 = vunpack.c.h.b16 %v1859
        %v2148 = vunpack.c.l.b16 %v1860
        %v2149 = vunpack.c.h.b16 %v1860
        %v2150 = vunpack.c.l.b16 %v1861
        %v2151 = vunpack.c.h.b16 %v1861
        %v2152 = vunpack.c.l.b16 %v1862
        %v2153 = vunpack.c.h.b16 %v1862
        %v2154 = vunpack.c.l.b16 %v1863
        %v2155 = vunpack.c.h.b16 %v1863
        %v2156 = vunpack.c.l.b16 %v1864
        %v2157 = vunpack.c.h.b16 %v1864
        %v2158 = vunpack.c.l.b16 %v1865
        %v2159 = vunpack.c.h.b16 %v1865
        %v2160 = vunpack.c.l.b16 %v1866
        %v2161 = vunpack.c.h.b16 %v1866
        %v2162 = vunpack.c.l.b16 %v1867
        %v2163 = vunpack.c.h.b16 %v1867
        %v2164 = vunpack.c.l.b16 %v1868
        %v2165 = vunpack.c.h.b16 %v1868
        %v2166 = vunpack.c.l.b16 %v1869
        %v2167 = vunpack.c.h.b16 %v1869
        %v2168 = vunpack.c.l.b16 %v1870
        %v2169 = vunpack.c.h.b16 %v1870
        %v2170 = vunpack.c.l.b16 %v1871
        %v2171 = vunpack.c.h.b16 %v1871
        %v2172 = vunpack.c.l.b16 %v1872
        %v2173 = vunpack.c.h.b16 %v1872
        %v2174 = vunpack.c.l.b16 %v1873
        %v2175 = vunpack.c.h.b16 %v1873
        %v2176 = vunpack.c.l.b16 %v1874
        %v2177 = vunpack.c.h.b16 %v1874
        %v2178 = vunpack.c.l.b16 %v1875
        %v2179 = vunpack.c.h.b16 %v1875
        %v2180 = vunpack.c.l.b16 %v1876
        %v2181 = vunpack.c.h.b16 %v1876
        %v2182 = vunpack.c.l.b16 %v1877
        %v2183 = vunpack.c.h.b16 %v1877
        %v2184 = vunpack.c.l.b16 %v1878
        %v2185 = vunpack.c.h.b16 %v1878
        %v2186 = vunpack.c.l.b16 %v1879
        %v2187 = vunpack.c.h.b16 %v1879
        %v2188 = vunpack.c.l.b16 %v1880
        %v2189 = vunpack.c.h.b16 %v1880
        %v2190 = vunpack.c.l.b16 %v1881
        %v2191 = vunpack.c.h.b16 %v1881
        %v2192 = vunpack.c.l.b16 %v1882
        %v2193 = vunpack.c.h.b16 %v1882
        %v2194 = vunpack.c.l.b16 %v1883
        %v2195 = vunpack.c.h.b16 %v1883
        %v2196 = vunpack.c.l.b16 %v1884
        %v2197 = vunpack.c.h.b16 %v1884
        %v2198 = vunpack.c.l.b16 %v1885
        %v2199 = vunpack.c.h.b16 %v1885
        %v2200 = vunpack.c.l.b16 %v1886
        %v2201 = vunpack.c.h.b16 %v1886
        %v2202 = vunpack.c.l.b16 %v1887
        %v2203 = vunpack.c.h.b16 %v1887
        %v2204 = vunpack.c.l.b16 %v1888
        %v2205 = vunpack.c.h.b16 %v1888
        %v2206 = vunpack.c.l.b16 %v1889
        %v2207 = vunpack.c.h.b16 %v1889
        %v2208 = vunpack.c.l.b16 %v1890
        %v2209 = vunpack.c.h.b16 %v1890
        %v2210 = vunpack.c.l.b16 %v1891
        %v2211 = vunpack.c.h.b16 %v1891
        %v2212 = vunpack.c.l.b16 %v1892
        %v2213 = vunpack.c.h.b16 %v1892
        %v2214 = vunpack.c.l.b16 %v1893
        %v2215 = vunpack.c.h.b16 %v1893
        %v2216 = vunpack.c.l.b16 %v1894
        %v2217 = vunpack.c.h.b16 %v1894
        %v2218 = vunpack.c.l.b16 %v1895
        %v2219 = vunpack.c.h.b16 %v1895
        %v2220 = vunpack.c.l.b16 %v1896
        %v2221 = vunpack.c.h.b16 %v1896
        %v2222 = vunpack.c.l.b16 %v1897
        %v2223 = vunpack.c.h.b16 %v1897
        %v2224 = vunpack.c.l.b16 %v1898
        %v2225 = vunpack.c.h.b16 %v1898
        %v2226 = vunpack.c.l.b16 %v1899
        %v2227 = vunpack.c.h.b16 %v1899
        %v2228 = vunpack.c.l.b16 %v1900
        %v2229 = vunpack.c.h.b16 %v1900
        %v2230 = vunpack.c.l.b16 %v1901
        %v2231 = vunpack.c.h.b16 %v1901
        %v2232 = vunpack.c.l.b16 %v1902
        %v2233 = vunpack.c.h.b16 %v1902
        %v2234 = vunpack.c.l.b16 %v1903
        %v2235 = vunpack.c.h.b16 %v1903
        %v2236 = vunpack.c.l.b16 %v1904
        %v2237 = vunpack.c.h.b16 %v1904
        %v2238 = vunpack.c.l.b16 %v1905
        %v2239 = vunpack.c.h.b16 %v1905
        %v2240 = vunpack.c.l.b16 %v1906
        %v2241 = vunpack.c.h.b16 %v1906
        %v2242 = vunpack.c.l.b16 %v1907
        %v2243 = vunpack.c.h.b16 %v1907
        %v2244 = vunpack.c.l.b16 %v1908
        %v2245 = vunpack.c.h.b16 %v1908
        %v2246 = vunpack.c.l.b16 %v1909
        %v2247 = vunpack.c.h.b16 %v1909
        %v2248 = vunpack.c.l.b16 %v1910
        %v2249 = vunpack.c.h.b16 %v1910
        %v2250 = vunpack.c.l.b16 %v1911
        %v2251 = vunpack.c.h.b16 %v1911
        %v2252 = vunpack.c.l.b16 %v1912
        %v2253 = vunpack.c.h.b16 %v1912
        %v2254 = vunpack.c.l.b16 %v1913
        %v2255 = vunpack.c.h.b16 %v1913
        %v2256 = vunpack.c.l.b16 %v1914
        %v2257 = vunpack.c.h.b16 %v1914
        %v2258 = vunpack.c.l.b16 %v1915
        %v2259 = vunpack.c.h.b16 %v1915
        %v2260 = vunpack.c.l.b16 %v1916
        %v2261 = vunpack.c.h.b16 %v1916
        %v2262 = vunpack.c.l.b16 %v1917
        %v2263 = vunpack.c.h.b16 %v1917
        %v2264 = vunpack.c.l.b16 %v1918
        %v2265 = vunpack.c.h.b16 %v1918
        %v2266 = vunpack.c.l.b16 %v1919
        %v2267 = vunpack.c.h.b16 %v1919
        %v2268 = vunpack.c.l.b16 %v1920
        %v2269 = vunpack.c.h.b16 %v1920
        %v2270 = vunpack.c.l.b16 %v1921
        %v2271 = vunpack.c.h.b16 %v1921
        %v2272 = vunpack.c.l.b16 %v1922
        %v2273 = vunpack.c.h.b16 %v1922
        %v2274 = vunpack.c.l.b16 %v1923
        %v2275 = vunpack.c.h.b16 %v1923
        %v2276 = vunpack.c.l.b16 %v1924
        %v2277 = vunpack.c.h.b16 %v1924
        %v2278 = vunpack.c.l.b16 %v1925
        %v2279 = vunpack.c.h.b16 %v1925
        %v2280 = vunpack.c.l.b16 %v1926
        %v2281 = vunpack.c.h.b16 %v1926
        %v2282 = vunpack.c.l.b16 %v1927
        %v2283 = vunpack.c.h.b16 %v1927
        %v2284 = vunpack.c.l.b16 %v1928
        %v2285 = vunpack.c.h.b16 %v1928
        %v2286 = vunpack.c.l.b16 %v1929
        %v2287 = vunpack.c.h.b16 %v1929
        %v2288 = vunpack.c.l.b16 %v1930
        %v2289 = vunpack.c.h.b16 %v1930
        %v2290 = vunpack.c.l.b16 %v1931
        %v2291 = vunpack.c.h.b16 %v1931
        %v2292 = vunpack.c.l.b16 %v1932
        %v2293 = vunpack.c.h.b16 %v1932
        %v2294 = vunpack.c.l.b16 %v1933
        %v2295 = vunpack.c.h.b16 %v1933
        %v2296 = vunpack.c.l.b16 %v1934
        %v2297 = vunpack.c.h.b16 %v1934
        %v2298 = vunpack.c.l.b16 %v1935
        %v2299 = vunpack.c.h.b16 %v1935
        %v2300 = vunpack.c.l.b16 %v1936
        %v2301 = vunpack.c.h.b16 %v1936
        %v2302 = vunpack.c.l.b16 %v1937
        %v2303 = vunpack.c.h.b16 %v1937
        %v2304 = vunpack.c.l.b16 %v1938
        %v2305 = vunpack.c.h.b16 %v1938
        %v2306 = vunpack.c.l.b16 %v1939
        %v2307 = vunpack.c.h.b16 %v1939
        %v2308 = vunpack.c.l.b16 %v1940
        %v2309 = vunpack.c.h.b16 %v1940
        %v2310 = vunpack.c.l.b16 %v1941
        %v2311 = vunpack.c.h.b16 %v1941
        %v2312 = vunpack.c.l.b16 %v1942
        %v2313 = vunpack.c.h.b16 %v1942
        %v2314 = vunpack.c.l.b16 %v1943
        %v2315 = vunpack.c.h.b16 %v1943
        %v2316 = vunpack.c.l.b16 %v1944
        %v2317 = vunpack.c.h.b16 %v1944
        %v2318 = vunpack.c.l.b16 %v1945
        %v2319 = vunpack.c.h.b16 %v1945
        %v2320 = vunpack.c.l.b16 %v1946
        %v2321 = vunpack.c.h.b16 %v1946
        %v2322 = vunpack.c.l.b16 %v1947
        %v2323 = vunpack.c.h.b16 %v1947
        %v2324 = vunpack.c.l.b16 %v1948
        %v2325 = vunpack.c.h.b16 %v1948
        %v2326 = vunpack.c.l.b16 %v1949
        %v2327 = vunpack.c.h.b16 %v1949
        %v2328 = vunpack.c.l.b16 %v1950
        %v2329 = vunpack.c.h.b16 %v1950
        %v2330 = vunpack.c.l.b16 %v1951
        %v2331 = vunpack.c.h.b16 %v1951
        %v2332 = vunpack.c.l.b16 %v1952
        %v2333 = vunpack.c.h.b16 %v1952
        %v2334 = vunpack.c.l.b16 %v1953
        %v2335 = vunpack.c.h.b16 %v1953
        %v2336 = vunpack.c.l.b16 %v1954
        %v2337 = vunpack.c.h.b16 %v1954
        %v2338 = vunpack.c.l.b16 %v1955
        %v2339 = vunpack.c.h.b16 %v1955
        %v2340 = vpack.c.b16 %v2088, %v2084
        %v2341 = vpack.c.b16 %v2089, %v2085
        %v2342 = vpack.c.b16 %v2090, %v2086
        %v2343 = vpack.c.b16 %v2091, %v2087
        %v2344 = vpack.c.b16 %v2096, %v2092
        %v2345 = vpack.c.b16 %v2097, %v2093
        %v2346 = vpack.c.b16 %v2098, %v2094
        %v2347 = vpack.c.b16 %v2099, %v2095
        %v2348 = vpack.c.b16 %v2104, %v2100
        %v2349 = vpack.c.b16 %v2105, %v2101
        %v2350 = vpack.c.b16 %v2106, %v2102
        %v2351 = vpack.c.b16 %v2107, %v2103
        %v2352 = vpack.c.b16 %v2112, %v2108
        %v2353 = vpack.c.b16 %v2113, %v2109
        %v2354 = vpack.c.b16 %v2114, %v2110
        %v2355 = vpack.c.b16 %v2115, %v2111
        %v2356 = vpack.c.b16 %v2120, %v2116
        %v2357 = vpack.c.b16 %v2121, %v2117
        %v2358 = vpack.c.b16 %v2122, %v2118
        %v2359 = vpack.c.b16 %v2123, %v2119
        %v2360 = vpack.c.b16 %v2128, %v2124
        %v2361 = vpack.c.b16 %v2129, %v2125
        %v2362 = vpack.c.b16 %v2130, %v2126
        %v2363 = vpack.c.b16 %v2131, %v2127
        %v2364 = vpack.c.b16 %v2136, %v2132
        %v2365 = vpack.c.b16 %v2137, %v2133
        %v2366 = vpack.c.b16 %v2138, %v2134
        %v2367 = vpack.c.b16 %v2139, %v2135
        %v2368 = vpack.c.b16 %v2144, %v2140
        %v2369 = vpack.c.b16 %v2145, %v2141
        %v2370 = vpack.c.b16 %v2146, %v2142
        %v2371 = vpack.c.b16 %v2147, %v2143
        %v2372 = vpack.c.b16 %v2152, %v2148
        %v2373 = vpack.c.b16 %v2153, %v2149
        %v2374 = vpack.c.b16 %v2154, %v2150
        %v2375 = vpack.c.b16 %v2155, %v2151
        %v2376 = vpack.c.b16 %v2160, %v2156
        %v2377 = vpack.c.b16 %v2161, %v2157
        %v2378 = vpack.c.b16 %v2162, %v2158
        %v2379 = vpack.c.b16 %v2163, %v2159
        %v2380 = vpack.c.b16 %v2168, %v2164
        %v2381 = vpack.c.b16 %v2169, %v2165
        %v2382 = vpack.c.b16 %v2170, %v2166
        %v2383 = vpack.c.b16 %v2171, %v2167
        %v2384 = vpack.c.b16 %v2176, %v2172
        %v2385 = vpack.c.b16 %v2177, %v2173
        %v2386 = vpack.c.b16 %v2178, %v2174
        %v2387 = vpack.c.b16 %v2179, %v2175
        %v2388 = vpack.c.b16 %v2184, %v2180
        %v2389 = vpack.c.b16 %v2185, %v2181
        %v2390 = vpack.c.b16 %v2186, %v2182
        %v2391 = vpack.c.b16 %v2187, %v2183
        %v2392 = vpack.c.b16 %v2192, %v2188
        %v2393 = vpack.c.b16 %v2193, %v2189
        %v2394 = vpack.c.b16 %v2194, %v2190
        %v2395 = vpack.c.b16 %v2195, %v2191
        %v2396 = vpack.c.b16 %v2200, %v2196
        %v2397 = vpack.c.b16 %v2201, %v2197
        %v2398 = vpack.c.b16 %v2202, %v2198
        %v2399 = vpack.c.b16 %v2203, %v2199
        %v2400 = vpack.c.b16 %v2208, %v2204
        %v2401 = vpack.c.b16 %v2209, %v2205
        %v2402 = vpack.c.b16 %v2210, %v2206
        %v2403 = vpack.c.b16 %v2211, %v2207
        %v2404 = vpack.c.b16 %v2216, %v2212
        %v2405 = vpack.c.b16 %v2217, %v2213
        %v2406 = vpack.c.b16 %v2218, %v2214
        %v2407 = vpack.c.b16 %v2219, %v2215
        %v2408 = vpack.c.b16 %v2224, %v2220
        %v2409 = vpack.c.b16 %v2225, %v2221
        %v2410 = vpack.c.b16 %v2226, %v2222
        %v2411 = vpack.c.b16 %v2227, %v2223
        %v2412 = vpack.c.b16 %v2232, %v2228
        %v2413 = vpack.c.b16 %v2233, %v2229
        %v2414 = vpack.c.b16 %v2234, %v2230
        %v2415 = vpack.c.b16 %v2235, %v2231
        %v2416 = vpack.c.b16 %v2240, %v2236
        %v2417 = vpack.c.b16 %v2241, %v2237
        %v2418 = vpack.c.b16 %v2242, %v2238
        %v2419 = vpack.c.b16 %v2243, %v2239
        %v2420 = vpack.c.b16 %v2248, %v2244
        %v2421 = vpack.c.b16 %v2249, %v2245
        %v2422 = vpack.c.b16 %v2250, %v2246
        %v2423 = vpack.c.b16 %v2251, %v2247
        %v2424 = vpack.c.b16 %v2256, %v2252
        %v2425 = vpack.c.b16 %v2257, %v2253
        %v2426 = vpack.c.b16 %v2258, %v2254
        %v2427 = vpack.c.b16 %v2259, %v2255
        %v2428 = vpack.c.b16 %v2264, %v2260
        %v2429 = vpack.c.b16 %v2265, %v2261
        %v2430 = vpack.c.b16 %v2266, %v2262
        %v2431 = vpack.c.b16 %v2267, %v2263
        %v2432 = vpack.c.b16 %v2272, %v2268
        %v2433 = vpack.c.b16 %v2273, %v2269
        %v2434 = vpack.c.b16 %v2274, %v2270
        %v2435 = vpack.c.b16 %v2275, %v2271
        %v2436 = vpack.c.b16 %v2280, %v2276
        %v2437 = vpack.c.b16 %v2281, %v2277
        %v2438 = vpack.c.b16 %v2282, %v2278
        %v2439 = vpack.c.b16 %v2283, %v2279
        %v2440 = vpack.c.b16 %v2288, %v2284
        %v2441 = vpack.c.b16 %v2289, %v2285
        %v2442 = vpack.c.b16 %v2290, %v2286
        %v2443 = vpack.c.b16 %v2291, %v2287
        %v2444 = vpack.c.b16 %v2296, %v2292
        %v2445 = vpack.c.b16 %v2297, %v2293
        %v2446 = vpack.c.b16 %v2298, %v2294
        %v2447 = vpack.c.b16 %v2299, %v2295
        %v2448 = vpack.c.b16 %v2304, %v2300
        %v2449 = vpack.c.b16 %v2305, %v2301
        %v2450 = vpack.c.b16 %v2306, %v2302
        %v2451 = vpack.c.b16 %v2307, %v2303
        %v2452 = vpack.c.b16 %v2312, %v2308
        %v2453 = vpack.c.b16 %v2313, %v2309
        %v2454 = vpack.c.b16 %v2314, %v2310
        %v2455 = vpack.c.b16 %v2315, %v2311
        %v2456 = vpack.c.b16 %v2320, %v2316
        %v2457 = vpack.c.b16 %v2321, %v2317
        %v2458 = vpack.c.b16 %v2322, %v2318
        %v2459 = vpack.c.b16 %v2323, %v2319
        %v2460 = vpack.c.b16 %v2328, %v2324
        %v2461 = vpack.c.b16 %v2329, %v2325
        %v2462 = vpack.c.b16 %v2330, %v2326
        %v2463 = vpack.c.b16 %v2331, %v2327
        %v2464 = vpack.c.b16 %v2336, %v2332
        %v2465 = vpack.c.b16 %v2337, %v2333
        %v2466 = vpack.c.b16 %v2338, %v2334
        %v2467 = vpack.c.b16 %v2339, %v2335
        %2596 = vmatpush.bf16.msra.mxu0 %v2368
        %2597 = vmatpush.bf16.msra.mxu0 %v2364
        %2598 = vmatpush.bf16.msra.mxu0 %v2360
        %2599 = vmatpush.bf16.msra.mxu0 %v2356
        %2600 = vmatpush.bf16.msra.mxu0 %v2352
        %2601 = vmatpush.bf16.msra.mxu0 %v2348
        %2602 = vmatpush.bf16.msra.mxu0 %v2344
        %2603 = vmatpush.bf16.msra.mxu0 %v2340
        %2604 = vmatmul.bf16.gmra.mxu0 %v1824
        %v2605 = vpop.f32.mrf.mxu0
        %v2606 = vadd.f32 0.0, %v2605
        %v2607 = vpop.f32.mrf.mxu0
        %2608 = vdwg.mxu0
        %2609 = vmatpush.bf16.msra.mxu0 %v2400
        %2610 = vmatpush.bf16.msra.mxu0 %v2396
        %2611 = vmatpush.bf16.msra.mxu0 %v2392
        %2612 = vmatpush.bf16.msra.mxu0 %v2388
        %2613 = vmatpush.bf16.msra.mxu0 %v2384
        %2614 = vmatpush.bf16.msra.mxu0 %v2380
        %2615 = vmatpush.bf16.msra.mxu0 %v2376
        %2616 = vmatpush.bf16.msra.mxu0 %v2372
        %2617 = vmatmul.bf16.gmra.mxu0 %v1825
        %v2618 = vpop.f32.mrf.mxu0
        %v2619 = vadd.f32 %v2606, %v2618
        %v2620 = vpop.f32.mrf.mxu0
        %2621 = vdwg.mxu0
        %2622 = vmatpush.bf16.msra.mxu0 %v2432
        %2623 = vmatpush.bf16.msra.mxu0 %v2428
        %2624 = vmatpush.bf16.msra.mxu0 %v2424
        %2625 = vmatpush.bf16.msra.mxu0 %v2420
        %2626 = vmatpush.bf16.msra.mxu0 %v2416
        %2627 = vmatpush.bf16.msra.mxu0 %v2412
        %2628 = vmatpush.bf16.msra.mxu0 %v2408
        %2629 = vmatpush.bf16.msra.mxu0 %v2404
        %2630 = vmatmul.bf16.gmra.mxu0 %v1826
        %v2631 = vpop.f32.mrf.mxu0
        %v2632 = vadd.f32 %v2619, %v2631
        %v2633 = vpop.f32.mrf.mxu0
        %2634 = vdwg.mxu0
        %2635 = vmatpush.bf16.msra.mxu0 %v2464
        %2636 = vmatpush.bf16.msra.mxu0 %v2460
        %2637 = vmatpush.bf16.msra.mxu0 %v2456
        %2638 = vmatpush.bf16.msra.mxu0 %v2452
        %2639 = vmatpush.bf16.msra.mxu0 %v2448
        %2640 = vmatpush.bf16.msra.mxu0 %v2444
        %2641 = vmatpush.bf16.msra.mxu0 %v2440
        %2642 = vmatpush.bf16.msra.mxu0 %v2436
        %2643 = vmatmul.bf16.gmra.mxu0 %v1827
        %v2644 = vpop.f32.mrf.mxu0
        %v2645 = vadd.f32 %v2632, %v2644
        %v2646 = vpop.f32.mrf.mxu0
        %2647 = vdwg.mxu0
        %2648 = vmatpush.bf16.msra.mxu0 %v2369
        %2649 = vmatpush.bf16.msra.mxu0 %v2365
        %2650 = vmatpush.bf16.msra.mxu0 %v2361
        %2651 = vmatpush.bf16.msra.mxu0 %v2357
        %2652 = vmatpush.bf16.msra.mxu0 %v2353
        %2653 = vmatpush.bf16.msra.mxu0 %v2349
        %2654 = vmatpush.bf16.msra.mxu0 %v2345
        %2655 = vmatpush.bf16.msra.mxu0 %v2341
        %2656 = vmatmul.bf16.gmra.mxu0 %v1824
        %v2657 = vpop.f32.mrf.mxu0
        %v2658 = vadd.f32 0.0, %v2657
        %v2659 = vpop.f32.mrf.mxu0
        %2660 = vdwg.mxu0
        %2661 = vmatpush.bf16.msra.mxu0 %v2401
        %2662 = vmatpush.bf16.msra.mxu0 %v2397
        %2663 = vmatpush.bf16.msra.mxu0 %v2393
        %2664 = vmatpush.bf16.msra.mxu0 %v2389
        %2665 = vmatpush.bf16.msra.mxu0 %v2385
        %2666 = vmatpush.bf16.msra.mxu0 %v2381
        %2667 = vmatpush.bf16.msra.mxu0 %v2377
        %2668 = vmatpush.bf16.msra.mxu0 %v2373
        %2669 = vmatmul.bf16.gmra.mxu0 %v1825
        %v2670 = vpop.f32.mrf.mxu0
        %v2671 = vadd.f32 %v2658, %v2670
        %v2672 = vpop.f32.mrf.mxu0
        %2673 = vdwg.mxu0
        %2674 = vmatpush.bf16.msra.mxu0 %v2433
        %2675 = vmatpush.bf16.msra.mxu0 %v2429
        %2676 = vmatpush.bf16.msra.mxu0 %v2425
        %2677 = vmatpush.bf16.msra.mxu0 %v2421
        %2678 = vmatpush.bf16.msra.mxu0 %v2417
        %2679 = vmatpush.bf16.msra.mxu0 %v2413
        %2680 = vmatpush.bf16.msra.mxu0 %v2409
        %2681 = vmatpush.bf16.msra.mxu0 %v2405
        %2682 = vmatmul.bf16.gmra.mxu0 %v1826
        %v2683 = vpop.f32.mrf.mxu0
        %v2684 = vadd.f32 %v2671, %v2683
        %v2685 = vpop.f32.mrf.mxu0
        %2686 = vdwg.mxu0
        %2687 = vmatpush.bf16.msra.mxu0 %v2465
        %2688 = vmatpush.bf16.msra.mxu0 %v2461
        %2689 = vmatpush.bf16.msra.mxu0 %v2457
        %2690 = vmatpush.bf16.msra.mxu0 %v2453
        %2691 = vmatpush.bf16.msra.mxu0 %v2449
        %2692 = vmatpush.bf16.msra.mxu0 %v2445
        %2693 = vmatpush.bf16.msra.mxu0 %v2441
        %2694 = vmatpush.bf16.msra.mxu0 %v2437
        %2695 = vmatmul.bf16.gmra.mxu0 %v1827
        %v2696 = vpop.f32.mrf.mxu0
        %v2697 = vadd.f32 %v2684, %v2696
        %v2698 = vpop.f32.mrf.mxu0
        %2699 = vdwg.mxu0
        %2700 = vmatpush.bf16.msra.mxu0 %v2370
        %2701 = vmatpush.bf16.msra.mxu0 %v2366
        %2702 = vmatpush.bf16.msra.mxu0 %v2362
        %2703 = vmatpush.bf16.msra.mxu0 %v2358
        %2704 = vmatpush.bf16.msra.mxu0 %v2354
        %2705 = vmatpush.bf16.msra.mxu0 %v2350
        %2706 = vmatpush.bf16.msra.mxu0 %v2346
        %2707 = vmatpush.bf16.msra.mxu0 %v2342
        %2708 = vmatmul.bf16.gmra.mxu0 %v1824
        %v2709 = vpop.f32.mrf.mxu0
        %v2710 = vadd.f32 0.0, %v2709
        %v2711 = vpop.f32.mrf.mxu0
        %2712 = vdwg.mxu0
        %2713 = vmatpush.bf16.msra.mxu0 %v2402
        %2714 = vmatpush.bf16.msra.mxu0 %v2398
        %2715 = vmatpush.bf16.msra.mxu0 %v2394
        %2716 = vmatpush.bf16.msra.mxu0 %v2390
        %2717 = vmatpush.bf16.msra.mxu0 %v2386
        %2718 = vmatpush.bf16.msra.mxu0 %v2382
        %2719 = vmatpush.bf16.msra.mxu0 %v2378
        %2720 = vmatpush.bf16.msra.mxu0 %v2374
        %2721 = vmatmul.bf16.gmra.mxu0 %v1825
        %v2722 = vpop.f32.mrf.mxu0
        %v2723 = vadd.f32 %v2710, %v2722
        %v2724 = vpop.f32.mrf.mxu0
        %2725 = vdwg.mxu0
        %2726 = vmatpush.bf16.msra.mxu0 %v2434
        %2727 = vmatpush.bf16.msra.mxu0 %v2430
        %2728 = vmatpush.bf16.msra.mxu0 %v2426
        %2729 = vmatpush.bf16.msra.mxu0 %v2422
        %2730 = vmatpush.bf16.msra.mxu0 %v2418
        %2731 = vmatpush.bf16.msra.mxu0 %v2414
        %2732 = vmatpush.bf16.msra.mxu0 %v2410
        %2733 = vmatpush.bf16.msra.mxu0 %v2406
        %2734 = vmatmul.bf16.gmra.mxu0 %v1826
        %v2735 = vpop.f32.mrf.mxu0
        %v2736 = vadd.f32 %v2723, %v2735
        %v2737 = vpop.f32.mrf.mxu0
        %2738 = vdwg.mxu0
        %2739 = vmatpush.bf16.msra.mxu0 %v2466
        %2740 = vmatpush.bf16.msra.mxu0 %v2462
        %2741 = vmatpush.bf16.msra.mxu0 %v2458
        %2742 = vmatpush.bf16.msra.mxu0 %v2454
        %2743 = vmatpush.bf16.msra.mxu0 %v2450
        %2744 = vmatpush.bf16.msra.mxu0 %v2446
        %2745 = vmatpush.bf16.msra.mxu0 %v2442
        %2746 = vmatpush.bf16.msra.mxu0 %v2438
        %2747 = vmatmul.bf16.gmra.mxu0 %v1827
        %v2748 = vpop.f32.mrf.mxu0
        %v2749 = vadd.f32 %v2736, %v2748
        %v2750 = vpop.f32.mrf.mxu0
        %2751 = vdwg.mxu0
        %2752 = vmatpush.bf16.msra.mxu0 %v2371
        %2753 = vmatpush.bf16.msra.mxu0 %v2367
        %2754 = vmatpush.bf16.msra.mxu0 %v2363
        %2755 = vmatpush.bf16.msra.mxu0 %v2359
        %2756 = vmatpush.bf16.msra.mxu0 %v2355
        %2757 = vmatpush.bf16.msra.mxu0 %v2351
        %2758 = vmatpush.bf16.msra.mxu0 %v2347
        %2759 = vmatpush.bf16.msra.mxu0 %v2343
        %2760 = vmatmul.bf16.gmra.mxu0 %v1824
        %v2761 = vpop.f32.mrf.mxu0
        %v2762 = vadd.f32 0.0, %v2761
        %v2763 = vpop.f32.mrf.mxu0
        %2764 = vdwg.mxu0
        %2765 = vmatpush.bf16.msra.mxu0 %v2403
        %2766 = vmatpush.bf16.msra.mxu0 %v2399
        %2767 = vmatpush.bf16.msra.mxu0 %v2395
        %2768 = vmatpush.bf16.msra.mxu0 %v2391
        %2769 = vmatpush.bf16.msra.mxu0 %v2387
        %2770 = vmatpush.bf16.msra.mxu0 %v2383
        %2771 = vmatpush.bf16.msra.mxu0 %v2379
        %2772 = vmatpush.bf16.msra.mxu0 %v2375
        %2773 = vmatmul.bf16.gmra.mxu0 %v1825
        %v2774 = vpop.f32.mrf.mxu0
        %v2775 = vadd.f32 %v2762, %v2774
        %v2776 = vpop.f32.mrf.mxu0
        %2777 = vdwg.mxu0
        %2778 = vmatpush.bf16.msra.mxu0 %v2435
        %2779 = vmatpush.bf16.msra.mxu0 %v2431
        %2780 = vmatpush.bf16.msra.mxu0 %v2427
        %2781 = vmatpush.bf16.msra.mxu0 %v2423
        %2782 = vmatpush.bf16.msra.mxu0 %v2419
        %2783 = vmatpush.bf16.msra.mxu0 %v2415
        %2784 = vmatpush.bf16.msra.mxu0 %v2411
        %2785 = vmatpush.bf16.msra.mxu0 %v2407
        %2786 = vmatmul.bf16.gmra.mxu0 %v1826
        %v2787 = vpop.f32.mrf.mxu0
        %v2788 = vadd.f32 %v2775, %v2787
        %v2789 = vpop.f32.mrf.mxu0
        %2790 = vdwg.mxu0
        %2791 = vmatpush.bf16.msra.mxu0 %v2467
        %2792 = vmatpush.bf16.msra.mxu0 %v2463
        %2793 = vmatpush.bf16.msra.mxu0 %v2459
        %2794 = vmatpush.bf16.msra.mxu0 %v2455
        %2795 = vmatpush.bf16.msra.mxu0 %v2451
        %2796 = vmatpush.bf16.msra.mxu0 %v2447
        %2797 = vmatpush.bf16.msra.mxu0 %v2443
        %2798 = vmatpush.bf16.msra.mxu0 %v2439
        %2799 = vmatmul.bf16.gmra.mxu0 %v1827
        %v2800 = vpop.f32.mrf.mxu0
        %v2801 = vadd.f32 %v2788, %v2800
        %v2802 = vpop.f32.mrf.mxu0
        %2803 = vdwg.mxu0
        %v2804 = vrot.slane %v2645, 4
        %v2805 = vadd.f32 %v2645, %v2804
        %v2806 = vrot.slane %v2805, 2
        %v2807 = vadd.f32 %v2805, %v2806
        %v2808 = vrot.slane %v2807, 1
        %v2809 = vadd.f32 %v2807, %v2808
        %v2810 = vrot.slane %v2697, 4
        %v2811 = vadd.f32 %v2697, %v2810
        %v2812 = vrot.slane %v2811, 2
        %v2813 = vadd.f32 %v2811, %v2812
        %v2814 = vrot.slane %v2813, 1
        %v2815 = vadd.f32 %v2813, %v2814
        %v2816 = vrot.slane %v2749, 4
        %v2817 = vadd.f32 %v2749, %v2816
        %v2818 = vrot.slane %v2817, 2
        %v2819 = vadd.f32 %v2817, %v2818
        %v2820 = vrot.slane %v2819, 1
        %v2821 = vadd.f32 %v2819, %v2820
        %v2822 = vrot.slane %v2801, 4
        %v2823 = vadd.f32 %v2801, %v2822
        %v2824 = vrot.slane %v2823, 2
        %v2825 = vadd.f32 %v2823, %v2824
        %v2826 = vrot.slane %v2825, 1
        %v2827 = vadd.f32 %v2825, %v2826
        %v2828 = vmul.f32 %v2809, %v539
        %v2829 = vmul.f32 %v2815, %v539
        %v2830 = vmul.f32 %v2821, %v539
        %v2831 = vmul.f32 %v2827, %v539
        %v2832 = vmul.f32 %v2645, %v2645
        %v2833 = vmul.f32 %v2697, %v2697
        %v2834 = vmul.f32 %v2749, %v2749
        %v2835 = vmul.f32 %v2801, %v2801
        %v2836 = vrot.slane %v2832, 4
        %v2837 = vadd.f32 %v2832, %v2836
        %v2838 = vrot.slane %v2837, 2
        %v2839 = vadd.f32 %v2837, %v2838
        %v2840 = vrot.slane %v2839, 1
        %v2841 = vadd.f32 %v2839, %v2840
        %v2842 = vrot.slane %v2833, 4
        %v2843 = vadd.f32 %v2833, %v2842
        %v2844 = vrot.slane %v2843, 2
        %v2845 = vadd.f32 %v2843, %v2844
        %v2846 = vrot.slane %v2845, 1
        %v2847 = vadd.f32 %v2845, %v2846
        %v2848 = vrot.slane %v2834, 4
        %v2849 = vadd.f32 %v2834, %v2848
        %v2850 = vrot.slane %v2849, 2
        %v2851 = vadd.f32 %v2849, %v2850
        %v2852 = vrot.slane %v2851, 1
        %v2853 = vadd.f32 %v2851, %v2852
        %v2854 = vrot.slane %v2835, 4
        %v2855 = vadd.f32 %v2835, %v2854
        %v2856 = vrot.slane %v2855, 2
        %v2857 = vadd.f32 %v2855, %v2856
        %v2858 = vrot.slane %v2857, 1
        %v2859 = vadd.f32 %v2857, %v2858
        %v2860 = vmul.f32 %v2841, %v539
        %v2861 = vmul.f32 %v2847, %v539
        %v2862 = vmul.f32 %v2853, %v539
        %v2863 = vmul.f32 %v2859, %v539
        %v2864 = vmul.f32 %v2828, %v2828
        %v2865 = vmul.f32 %v2829, %v2829
        %v2866 = vmul.f32 %v2830, %v2830
        %v2867 = vmul.f32 %v2831, %v2831
        %v2868 = vsub.f32 %v2860, %v2864
        %v2869 = vsub.f32 %v2861, %v2865
        %v2870 = vsub.f32 %v2862, %v2866
        %v2871 = vsub.f32 %v2863, %v2867
        %v2872 = vmax.f32 %v2868, 0.0
        %v2873 = vmax.f32 %v2869, 0.0
        %v2874 = vmax.f32 %v2870, 0.0
        %v2875 = vmax.f32 %v2871, 0.0
        %v2876 = vadd.f32 %v2872, 1e-05
        %v2877 = vadd.f32 %v2873, 1e-05
        %v2878 = vadd.f32 %v2874, 1e-05
        %v2879 = vadd.f32 %v2875, 1e-05
        %v2880 = vrsqrt.pop %v2876
        %v2881 = vmul.f32 %v2880, %v2876
        %v2882 = vmul.f32 %v2881, %v2880
        %v2883 = vmul.f32 0.5, %v2882
        %v2884 = vsub.f32 1.5, %v2883
        %v2885 = vmul.f32 %v2880, %v2884
        %vm2886 = vweird.f32 %v2876
        %vm2887 = vweird.f32 %v2880
        %vm2888 = vmor %vm2886, %vm2887
        %v2889 = vsel %vm2888, %v2880, %v2885
        %v2890 = vrsqrt.pop %v2877
        %v2891 = vmul.f32 %v2890, %v2877
        %v2892 = vmul.f32 %v2891, %v2890
        %v2893 = vmul.f32 0.5, %v2892
        %v2894 = vsub.f32 1.5, %v2893
        %v2895 = vmul.f32 %v2890, %v2894
        %vm2896 = vweird.f32 %v2877
        %vm2897 = vweird.f32 %v2890
        %vm2898 = vmor %vm2896, %vm2897
        %v2899 = vsel %vm2898, %v2890, %v2895
        %v2900 = vrsqrt.pop %v2878
        %v2901 = vmul.f32 %v2900, %v2878
        %v2902 = vmul.f32 %v2901, %v2900
        %v2903 = vmul.f32 0.5, %v2902
        %v2904 = vsub.f32 1.5, %v2903
        %v2905 = vmul.f32 %v2900, %v2904
        %vm2906 = vweird.f32 %v2878
        %vm2907 = vweird.f32 %v2900
        %vm2908 = vmor %vm2906, %vm2907
        %v2909 = vsel %vm2908, %v2900, %v2905
        %v2910 = vrsqrt.pop %v2879
        %v2911 = vmul.f32 %v2910, %v2879
        %v2912 = vmul.f32 %v2911, %v2910
        %v2913 = vmul.f32 0.5, %v2912
        %v2914 = vsub.f32 1.5, %v2913
        %v2915 = vmul.f32 %v2910, %v2914
        %vm2916 = vweird.f32 %v2879
        %vm2917 = vweird.f32 %v2910
        %vm2918 = vmor %vm2916, %vm2917
        %v2919 = vsel %vm2918, %v2910, %v2915
        %v2920 = vmul.f32 %v351, %v2889
        %v2921 = vmul.f32 %v352, %v2899
        %v2922 = vmul.f32 %v353, %v2909
        %v2923 = vmul.f32 %v354, %v2919
        %v2924 = vmul.f32 %v2828, %v2920
        %v2925 = vmul.f32 %v2829, %v2921
        %v2926 = vmul.f32 %v2830, %v2922
        %v2927 = vmul.f32 %v2831, %v2923
        %v2932 = vrot.slane %v2924, 7
        %v2933 = vrot.slane %v2925, 7
        %v2934 = vrot.slane %v2926, 7
        %v2935 = vrot.slane %v2927, 7
        %v2940 = vsub.f32 %v351, %v2932
        %v2941 = vsub.f32 %v352, %v2933
        %v2942 = vsub.f32 %v353, %v2934
        %v2943 = vsub.f32 %v354, %v2935
        %v2944 = vperm.slane %v2920, 4
        %v2945 = vperm.slane %v2921, 4
        %v2946 = vperm.slane %v2922, 4
        %v2947 = vperm.slane %v2923, 4
        %v2948 = vmul.f32 %v2645, %v2944
        %v2949 = vmul.f32 %v2697, %v2945
        %v2950 = vmul.f32 %v2749, %v2946
        %v2951 = vmul.f32 %v2801, %v2947
        %v2952 = vperm.slane %v2940, 5
        %v2953 = vperm.slane %v2941, 5
        %v2954 = vperm.slane %v2942, 5
        %v2955 = vperm.slane %v2943, 5
        %v2956 = vadd.f32 %v2948, %v2952
        %v2957 = vadd.f32 %v2949, %v2953
        %v2958 = vadd.f32 %v2950, %v2954
        %v2959 = vadd.f32 %v2951, %v2955
        %v2960 = vmul.f32 %v2956, 0.01
        %v2961 = vmul.f32 %v2957, 0.01
        %v2962 = vmul.f32 %v2958, 0.01
        %v2963 = vmul.f32 %v2959, 0.01
        %v2964 = vmax.f32 %v2956, %v2960
        %v2965 = vmax.f32 %v2957, %v2961
        %v2966 = vmax.f32 %v2958, %v2962
        %v2967 = vmax.f32 %v2959, %v2963
        %v2968 = vpack.c.bf16 %v2964, %v2964
        %v2969 = vpack.c.bf16 %v2965, %v2965
        %v2970 = vpack.c.bf16 %v2966, %v2966
        %v2971 = vpack.c.bf16 %v2967, %v2967
        %v2972 = vld [vmem:[#allocation10] sm:$0xf]
        %v2973 = vld [vmem:[#allocation10 + $0x4] sm:$0xf]
        %v2974 = vld [vmem:[#allocation10 + $0x8] sm:$0xf]
        %v2975 = vld [vmem:[#allocation10 + $0xc] sm:$0xf]
        %v2976 = vld [vmem:[#allocation10 + $0x10] sm:$0xf]
        %v2977 = vld [vmem:[#allocation10 + $0x14] sm:$0xf]
        %v2978 = vld [vmem:[#allocation10 + $0x18] sm:$0xf]
        %v2979 = vld [vmem:[#allocation10 + $0x1c] sm:$0xf]
        %v2980 = vld [vmem:[#allocation10 + $0x20] sm:$0xf]
        %v2981 = vld [vmem:[#allocation10 + $0x24] sm:$0xf]
        %v2982 = vld [vmem:[#allocation10 + $0x28] sm:$0xf]
        %v2983 = vld [vmem:[#allocation10 + $0x2c] sm:$0xf]
        %v2984 = vld [vmem:[#allocation10 + $0x30] sm:$0xf]
        %v2985 = vld [vmem:[#allocation10 + $0x34] sm:$0xf]
        %v2986 = vld [vmem:[#allocation10 + $0x38] sm:$0xf]
        %v2987 = vld [vmem:[#allocation10 + $0x3c] sm:$0xf]
        %v2988 = vld [vmem:[#allocation10 + $0x40] sm:$0xf]
        %v2989 = vld [vmem:[#allocation10 + $0x44] sm:$0xf]
        %v2990 = vld [vmem:[#allocation10 + $0x48] sm:$0xf]
        %v2991 = vld [vmem:[#allocation10 + $0x4c] sm:$0xf]
        %v2992 = vld [vmem:[#allocation10 + $0x50] sm:$0xf]
        %v2993 = vld [vmem:[#allocation10 + $0x54] sm:$0xf]
        %v2994 = vld [vmem:[#allocation10 + $0x58] sm:$0xf]
        %v2995 = vld [vmem:[#allocation10 + $0x5c] sm:$0xf]
        %v2996 = vld [vmem:[#allocation10 + $0x60] sm:$0xf]
        %v2997 = vld [vmem:[#allocation10 + $0x64] sm:$0xf]
        %v2998 = vld [vmem:[#allocation10 + $0x68] sm:$0xf]
        %v2999 = vld [vmem:[#allocation10 + $0x6c] sm:$0xf]
        %v3000 = vld [vmem:[#allocation10 + $0x70] sm:$0xf]
        %v3001 = vld [vmem:[#allocation10 + $0x74] sm:$0xf]
        %v3002 = vld [vmem:[#allocation10 + $0x78] sm:$0xf]
        %v3003 = vld [vmem:[#allocation10 + $0x7c] sm:$0xf]
        %v3004 = vld [vmem:[#allocation10 + $0x80] sm:$0xf]
        %v3005 = vld [vmem:[#allocation10 + $0x84] sm:$0xf]
        %v3006 = vld [vmem:[#allocation10 + $0x88] sm:$0xf]
        %v3007 = vld [vmem:[#allocation10 + $0x8c] sm:$0xf]
        %v3008 = vld [vmem:[#allocation10 + $0x90] sm:$0xf]
        %v3009 = vld [vmem:[#allocation10 + $0x94] sm:$0xf]
        %v3010 = vld [vmem:[#allocation10 + $0x98] sm:$0xf]
        %v3011 = vld [vmem:[#allocation10 + $0x9c] sm:$0xf]
        %v3012 = vld [vmem:[#allocation10 + $0xa0] sm:$0xf]
        %v3013 = vld [vmem:[#allocation10 + $0xa4] sm:$0xf]
        %v3014 = vld [vmem:[#allocation10 + $0xa8] sm:$0xf]
        %v3015 = vld [vmem:[#allocation10 + $0xac] sm:$0xf]
        %v3016 = vld [vmem:[#allocation10 + $0xb0] sm:$0xf]
        %v3017 = vld [vmem:[#allocation10 + $0xb4] sm:$0xf]
        %v3018 = vld [vmem:[#allocation10 + $0xb8] sm:$0xf]
        %v3019 = vld [vmem:[#allocation10 + $0xbc] sm:$0xf]
        %v3020 = vld [vmem:[#allocation10 + $0xc0] sm:$0xf]
        %v3021 = vld [vmem:[#allocation10 + $0xc4] sm:$0xf]
        %v3022 = vld [vmem:[#allocation10 + $0xc8] sm:$0xf]
        %v3023 = vld [vmem:[#allocation10 + $0xcc] sm:$0xf]
        %v3024 = vld [vmem:[#allocation10 + $0xd0] sm:$0xf]
        %v3025 = vld [vmem:[#allocation10 + $0xd4] sm:$0xf]
        %v3026 = vld [vmem:[#allocation10 + $0xd8] sm:$0xf]
        %v3027 = vld [vmem:[#allocation10 + $0xdc] sm:$0xf]
        %v3028 = vld [vmem:[#allocation10 + $0xe0] sm:$0xf]
        %v3029 = vld [vmem:[#allocation10 + $0xe4] sm:$0xf]
        %v3030 = vld [vmem:[#allocation10 + $0xe8] sm:$0xf]
        %v3031 = vld [vmem:[#allocation10 + $0xec] sm:$0xf]
        %v3032 = vld [vmem:[#allocation10 + $0xf0] sm:$0xf]
        %v3033 = vld [vmem:[#allocation10 + $0xf4] sm:$0xf]
        %v3034 = vld [vmem:[#allocation10 + $0xf8] sm:$0xf]
        %v3035 = vld [vmem:[#allocation10 + $0xfc] sm:$0xf]
        %v3036 = vperm.slane %v351, 6
        %v3101 = vunpack.c.l.b16 %v2972
        %v3102 = vunpack.c.l.b16 %v2973
        %v3103 = vunpack.c.l.b16 %v2974
        %v3104 = vunpack.c.l.b16 %v2975
        %v3105 = vunpack.c.l.b16 %v2976
        %v3106 = vunpack.c.l.b16 %v2977
        %v3107 = vunpack.c.l.b16 %v2978
        %v3108 = vunpack.c.l.b16 %v2979
        %v3109 = vunpack.c.l.b16 %v2980
        %v3110 = vunpack.c.l.b16 %v2981
        %v3111 = vunpack.c.l.b16 %v2982
        %v3112 = vunpack.c.l.b16 %v2983
        %v3113 = vunpack.c.l.b16 %v2984
        %v3114 = vunpack.c.l.b16 %v2985
        %v3115 = vunpack.c.l.b16 %v2986
        %v3116 = vunpack.c.l.b16 %v2987
        %v3117 = vunpack.c.l.b16 %v2988
        %v3118 = vunpack.c.l.b16 %v2989
        %v3119 = vunpack.c.l.b16 %v2990
        %v3120 = vunpack.c.l.b16 %v2991
        %v3121 = vunpack.c.l.b16 %v2992
        %v3122 = vunpack.c.l.b16 %v2993
        %v3123 = vunpack.c.l.b16 %v2994
        %v3124 = vunpack.c.l.b16 %v2995
        %v3125 = vunpack.c.l.b16 %v2996
        %v3126 = vunpack.c.l.b16 %v2997
        %v3127 = vunpack.c.l.b16 %v2998
        %v3128 = vunpack.c.l.b16 %v2999
        %v3129 = vunpack.c.l.b16 %v3000
        %v3130 = vunpack.c.l.b16 %v3001
        %v3131 = vunpack.c.l.b16 %v3002
        %v3132 = vunpack.c.l.b16 %v3003
        %v3133 = vunpack.c.l.b16 %v3004
        %v3134 = vunpack.c.l.b16 %v3005
        %v3135 = vunpack.c.l.b16 %v3006
        %v3136 = vunpack.c.l.b16 %v3007
        %v3137 = vunpack.c.l.b16 %v3008
        %v3138 = vunpack.c.l.b16 %v3009
        %v3139 = vunpack.c.l.b16 %v3010
        %v3140 = vunpack.c.l.b16 %v3011
        %v3141 = vunpack.c.l.b16 %v3012
        %v3142 = vunpack.c.l.b16 %v3013
        %v3143 = vunpack.c.l.b16 %v3014
        %v3144 = vunpack.c.l.b16 %v3015
        %v3145 = vunpack.c.l.b16 %v3016
        %v3146 = vunpack.c.l.b16 %v3017
        %v3147 = vunpack.c.l.b16 %v3018
        %v3148 = vunpack.c.l.b16 %v3019
        %v3149 = vunpack.c.l.b16 %v3020
        %v3150 = vunpack.c.l.b16 %v3021
        %v3151 = vunpack.c.l.b16 %v3022
        %v3152 = vunpack.c.l.b16 %v3023
        %v3153 = vunpack.c.l.b16 %v3024
        %v3154 = vunpack.c.l.b16 %v3025
        %v3155 = vunpack.c.l.b16 %v3026
        %v3156 = vunpack.c.l.b16 %v3027
        %v3157 = vunpack.c.l.b16 %v3028
        %v3158 = vunpack.c.l.b16 %v3029
        %v3159 = vunpack.c.l.b16 %v3030
        %v3160 = vunpack.c.l.b16 %v3031
        %v3161 = vunpack.c.l.b16 %v3032
        %v3162 = vunpack.c.l.b16 %v3033
        %v3163 = vunpack.c.l.b16 %v3034
        %v3164 = vunpack.c.l.b16 %v3035
        %v3165 = vpack.c.b16 %v3102, %v3101
        %v3166 = vpack.c.b16 %v3104, %v3103
        %v3167 = vpack.c.b16 %v3106, %v3105
        %v3168 = vpack.c.b16 %v3108, %v3107
        %v3169 = vpack.c.b16 %v3110, %v3109
        %v3170 = vpack.c.b16 %v3112, %v3111
        %v3171 = vpack.c.b16 %v3114, %v3113
        %v3172 = vpack.c.b16 %v3116, %v3115
        %v3173 = vpack.c.b16 %v3118, %v3117
        %v3174 = vpack.c.b16 %v3120, %v3119
        %v3175 = vpack.c.b16 %v3122, %v3121
        %v3176 = vpack.c.b16 %v3124, %v3123
        %v3177 = vpack.c.b16 %v3126, %v3125
        %v3178 = vpack.c.b16 %v3128, %v3127
        %v3179 = vpack.c.b16 %v3130, %v3129
        %v3180 = vpack.c.b16 %v3132, %v3131
        %v3181 = vpack.c.b16 %v3134, %v3133
        %v3182 = vpack.c.b16 %v3136, %v3135
        %v3183 = vpack.c.b16 %v3138, %v3137
        %v3184 = vpack.c.b16 %v3140, %v3139
        %v3185 = vpack.c.b16 %v3142, %v3141
        %v3186 = vpack.c.b16 %v3144, %v3143
        %v3187 = vpack.c.b16 %v3146, %v3145
        %v3188 = vpack.c.b16 %v3148, %v3147
        %v3189 = vpack.c.b16 %v3150, %v3149
        %v3190 = vpack.c.b16 %v3152, %v3151
        %v3191 = vpack.c.b16 %v3154, %v3153
        %v3192 = vpack.c.b16 %v3156, %v3155
        %v3193 = vpack.c.b16 %v3158, %v3157
        %v3194 = vpack.c.b16 %v3160, %v3159
        %v3195 = vpack.c.b16 %v3162, %v3161
        %v3196 = vpack.c.b16 %v3164, %v3163
        %3229 = vmatpush.bf16.msra.mxu0 %v3172
        %3230 = vmatpush.bf16.msra.mxu0 %v3171
        %3231 = vmatpush.bf16.msra.mxu0 %v3170
        %3232 = vmatpush.bf16.msra.mxu0 %v3169
        %3233 = vmatpush.bf16.msra.mxu0 %v3168
        %3234 = vmatpush.bf16.msra.mxu0 %v3167
        %3235 = vmatpush.bf16.msra.mxu0 %v3166
        %3236 = vmatpush.bf16.msra.mxu0 %v3165
        %3237 = vmatmul.bf16.gmra.mxu0 %v2968
        %v3238 = vpop.f32.mrf.mxu0
        %v3239 = vadd.f32 %v3036, %v3238
        %v3240 = vpop.f32.mrf.mxu0
        %3241 = vdwg.mxu0
        %3242 = vmatpush.bf16.msra.mxu0 %v3180
        %3243 = vmatpush.bf16.msra.mxu0 %v3179
        %3244 = vmatpush.bf16.msra.mxu0 %v3178
        %3245 = vmatpush.bf16.msra.mxu0 %v3177
        %3246 = vmatpush.bf16.msra.mxu0 %v3176
        %3247 = vmatpush.bf16.msra.mxu0 %v3175
        %3248 = vmatpush.bf16.msra.mxu0 %v3174
        %3249 = vmatpush.bf16.msra.mxu0 %v3173
        %3250 = vmatmul.bf16.gmra.mxu0 %v2969
        %v3251 = vpop.f32.mrf.mxu0
        %v3252 = vadd.f32 %v3239, %v3251
        %v3253 = vpop.f32.mrf.mxu0
        %3254 = vdwg.mxu0
        %3255 = vmatpush.bf16.msra.mxu0 %v3188
        %3256 = vmatpush.bf16.msra.mxu0 %v3187
        %3257 = vmatpush.bf16.msra.mxu0 %v3186
        %3258 = vmatpush.bf16.msra.mxu0 %v3185
        %3259 = vmatpush.bf16.msra.mxu0 %v3184
        %3260 = vmatpush.bf16.msra.mxu0 %v3183
        %3261 = vmatpush.bf16.msra.mxu0 %v3182
        %3262 = vmatpush.bf16.msra.mxu0 %v3181
        %3263 = vmatmul.bf16.gmra.mxu0 %v2970
        %v3264 = vpop.f32.mrf.mxu0
        %v3265 = vadd.f32 %v3252, %v3264
        %v3266 = vpop.f32.mrf.mxu0
        %3267 = vdwg.mxu0
        %3268 = vmatpush.bf16.msra.mxu0 %v3196
        %3269 = vmatpush.bf16.msra.mxu0 %v3195
        %3270 = vmatpush.bf16.msra.mxu0 %v3194
        %3271 = vmatpush.bf16.msra.mxu0 %v3193
        %3272 = vmatpush.bf16.msra.mxu0 %v3192
        %3273 = vmatpush.bf16.msra.mxu0 %v3191
        %3274 = vmatpush.bf16.msra.mxu0 %v3190
        %3275 = vmatpush.bf16.msra.mxu0 %v3189
        %3276 = vmatmul.bf16.gmra.mxu0 %v2971
        %v3277 = vpop.f32.mrf.mxu0
        %v3278 = vadd.f32 %v3265, %v3277
        %v3279 = vpop.f32.mrf.mxu0
        %3280 = vdwg.mxu0
        %3281 = vst [vmem:[%s349] sm:$0xff] %v3278
        %s3282 = sand.u32 %s165, 1
        %s3283 = scalar_lea.sflag [#allocation4], %s3282
        %s3284 = sand.u32 %s165, 1
        %s3285 = smul.addr %s3284, 8
        %s3286 = scalar_lea.vmem [#allocation13], %s3285
        // Predicated region
        $region69: #{tpu_custom_call.1} parent=43 // pred_check
          %p3287 = pneg %p175
        $region70: #{tpu_custom_call.1} parent=43 // pred_check_branch
          %3289 = sbr.rel (%p3287) target = $region72
        $region71: #{tpu_custom_call.1} parent=43 // pred_region
          %3291 = vsyncadd %s3283, 0
          %s3292 = smul.addr %s26, 8
          %s3293 = scalar_lea.hbm %s6, %s3292
          %s3295 = sshll.u32 %s3286, 4
          %s3296 = int_to_ptr.vmem [resolvable:$true] %s3295
          %s3297 = sshll.u32 %s3293, 4
          %s3298 = int_to_ptr.hbm [resolvable:$true] %s3297
          %3300 = dma.vmem_to_hbm [thread:$0]  %s3296, 128, %s3298, %s3283
        $region72: #{tpu_custom_call.1} parent=43 // pred_fallthru
          _
      $region44: #{tpu_custom_call.1} parent=5 // pred_fallthru
        _
      %p3301 = scmp.le.s32.totalorder 2, %s21
      // Predicated region
      $region73: #{tpu_custom_call.1} parent=5 // pred_check
        %p3302 = pneg %p3301
      $region74: #{tpu_custom_call.1} parent=5 // pred_check_branch
        %3304 = sbr.rel (%p3302) target = $region76
      $region75: #{tpu_custom_call.1} parent=5 // pred_region
        %s3305 = ssub.s32 %s21, 2
        // Predicated region
        $region77: #{tpu_custom_call.1} parent=75 // pred_check
          %p3306 = pneg %p181
        $region78: #{tpu_custom_call.1} parent=75 // pred_check_branch
          %3308 = sbr.rel (%p3306) target = $region80
        $region79: #{tpu_custom_call.1} parent=75 // pred_region
          %s3309 = sand.u32 %s166, 1
          %s3310 = scalar_lea.sflag [#allocation4], %s3309
          %s3311 = sand.u32 %s166, 1
          %s3312 = smul.addr %s3311, 8
          %s3313 = scalar_lea.vmem [#allocation13], %s3312
          %3315 = dma.done %s3310, 128
        $region80: #{tpu_custom_call.1} parent=75 // pred_fallthru
          _
      $region76: #{tpu_custom_call.1} parent=5 // pred_fallthru
        _
    $region6: #{tpu_custom_call.1} parent=1 // loop_footer
      %s25 = sadd.s32 1, %s21
    $region7: #{tpu_custom_call.1} parent=1 // loop_footer_branch
      %20 = sbr.rel target = $region3
    $region8: #{tpu_custom_call.1} parent=1 // loop_exit
      _
    %3316 = vsyncpa [#allocation3], 1
    %s3317 = scalar_lea.sflag [#allocation3], 1
    %3318 = vsyncpa %s3317, 1
    %3319 = vsyncpa [#allocation6], 1
    %3320 = vsyncpa [#allocation9], 1
    %3321 = vsyncpa [#allocation12], 1
    %3322 = vsyncpa [#allocation4], 1
    %s3323 = scalar_lea.sflag [#allocation4], 1
    %3324 = vsyncpa %s3323, 1

</llo_original>
